<compile_context>
chip_gen: v7x
topology: tpu7x:2x2x1
jax: 0.10.0
libtpu: 0.0.40
codegen_flags: <defaults>
</compile_context>

<pallas_src>
import jax
import jax.numpy as jnp
from jax.experimental import pallas as pl
from jax.experimental.pallas import tpu as pltpu


def _lin_attention_bridge_kernel(x_ref, mask_ref, w1_ref, b1_ref, w2_ref, b2_ref,
                                 gamma_ref, beta_ref, alphas_ref, out_ref):
    TB, L, H = x_ref.shape
    R = w2_ref.shape[1]

    x = x_ref[...]                                   # (TB, L, H) bf16 (MXU dtype)
    x2d = x.reshape(TB * L, H)                       # layout-preserving (L sublane-padded)

    # ws1 (Linear d->u) + ReLU: bf16 MXU operands, f32 accumulation, one big matmul.
    h = jnp.dot(x2d, w1_ref[...], preferred_element_type=jnp.float32)
    h = jnp.maximum(h + b1_ref[...], 0.0)            # (TB*L, U) f32

    # ws2 (Linear u->r) -> attention scores.
    s = jnp.dot(h.astype(w2_ref.dtype), w2_ref[...],
                preferred_element_type=jnp.float32) + b2_ref[...]   # (TB*L, R) f32

    # Transpose to (TB, R, L) immediately (small XLU transpose) so the softmax
    # runs lane-dense over L and alphas are stored in the module's layout.
    s = jnp.transpose(s.reshape(TB, L, R), (0, 2, 1))                # (TB, R, L)

    # Additive mask bias computed in-kernel (free VPU filler); mask (TB, 1, L)
    # sublane-broadcasts over R.  `>= 0.5` is robust to non-exact 0/1 masks
    # (identical to the module's `== 1` for true binary masks).
    s = s + jnp.where(mask_ref[...] >= 0.5, -10000.0, 0.0)

    # Softmax over L (lane axis), all f32, exact divide so rows sum to 1.
    m = jnp.max(s, axis=-1, keepdims=True)
    e = jnp.exp(s - m)
    p = e / jnp.sum(e, axis=-1, keepdims=True)                       # (TB, R, L)
    alphas_ref[...] = p.astype(alphas_ref.dtype)
    # Note: the context below consumes a bf16 copy of p while alphas_ref stores
    # p in alphas_dtype (both derived from the same f32 softmax).

    # Context: (TB, R, L) x (TB, L, H) -> (TB, R, H), f32 accumulation on the MXU.
    ctx = jax.lax.dot_general(
        p.astype(x.dtype), x,
        dimension_numbers=(((2,), (1,)), ((0,), (0,))),
        preferred_element_type=jnp.float32)

    # LayerNorm over H (eps=1e-6, affine), f32.
    mu = jnp.mean(ctx, axis=-1, keepdims=True)
    var = jnp.mean((ctx - mu) ** 2, axis=-1, keepdims=True)
    normed = (ctx - mu) * jax.lax.rsqrt(var + 1e-6)
    out_ref[...] = (normed * gamma_ref[...] + beta_ref[...]).astype(out_ref.dtype)


def _round_up(n, m):
    return ((n + m - 1) // m) * m


def _vmem_capacity_bytes():
    try:
        return int(pltpu.get_tpu_info().vmem_capacity_bytes)
    except Exception:
        return 64 << 20          # conservative fallback: v7x per-TensorCore VMEM


def _pick_batch_tile(B, L, vmem_cap):
    """Fold batch elements per grid step so the MXU sees TB*L rows, while
    keeping >= 2 (and preferably an even number of) grid steps so both v7x
    TensorCores get equal work."""
    target_rows = 2048 if vmem_cap >= (100 << 20) else 512   # 128-MiB parts vs v7x
    divisors = [t for t in range(1, B + 1) if B % t == 0]
    viable = [t for t in divisors if t * L <= target_rows] or [1]
    tb = max(viable)
    if B // tb < 2 and B > 1:
        cands = ([t for t in viable if B // t >= 2]
                 or [t for t in divisors if B // t >= 2])
        tb = max(cands)
    if (B // tb) > 1 and (B // tb) % 2 == 1:
        even = [t for t in viable if (B // t) >= 2 and (B // t) % 2 == 0]
        if even:
            tb = max(even)
    return tb


def lin_attention_bridge(x, mask, w1, b1, w2, b2, gamma, beta, *,
                         batch_tile=None, mxu_dtype=jnp.bfloat16,
                         alphas_dtype=jnp.bfloat16):
    """Forward of LinAttentionBridgeLayer (ab_layer_norm='layernorm').

    x: (B, L, H) f32.  mask: (B, 1, L) binary (1 => key gets ~zero attention) or None.
    w1: (H, U) = ws1.weight.T, b1: (U,);  w2: (U, R) = ws2.weight.T, b2: (R,);
    gamma/beta: (H,) LayerNorm affine.  Returns (alphas (B, R, L), output (B, R, H)).
    """
    B, L, H = x.shape
    U = w1.shape[1]
    R = w2.shape[1]

    if mask is None:
        mask = jnp.zeros((B, 1, L), dtype=jnp.float32)
    mask = mask.reshape(B, 1, L).astype(jnp.float32)

    # ---- wrapper-side layout prep (plain JAX, computed once) ----------------
    # Pad L to the sublane tile of the MXU dtype so in-kernel reshapes are
    # layout preserving; padded keys are masked (=> exactly zero attention).
    sublane = 16 if jnp.dtype(mxu_dtype).itemsize == 2 else 8
    Lp = _round_up(L, sublane)
    if Lp != L:
        x = jnp.pad(x, ((0, 0), (0, Lp - L), (0, 0)))
        mask = jnp.pad(mask, ((0, 0), (0, 0), (0, Lp - L)), constant_values=1.0)
    # Pad the bridge dim U (N of the first matmul / K of the second) to a lane
    # multiple so the dominant (TB*L, H) x (H, U) matmul has no ragged MXU
    # passes (128 is safe on all generations; use 256 on v6e/v7x if desired).
    # Zero-padded columns stay exactly zero through ReLU -> no semantic change.
    Up = _round_up(U, 128)
    if Up != U:
        w1 = jnp.pad(w1, ((0, 0), (0, Up - U)))
        b1 = jnp.pad(b1, ((0, Up - U),))
        w2 = jnp.pad(w2, ((0, Up - U), (0, 0)))
    # The R-sized matmuls (M or N = R << 128) are accepted as MXU filler.

    vmem_cap = _vmem_capacity_bytes()
    TB = batch_tile if batch_tile is not None else _pick_batch_tile(B, Lp, vmem_cap)
    assert B % TB == 0, "batch_tile must divide the batch size"
    grid = (B // TB,)
    # TODO(synk): when B // TB == 1 (tiny batch) add a second 'parallel' grid
    # axis over R tiles so both v7x TensorCores still get work.
    # TODO(synk): for very long sequences where a (TB, Lp, H) block no longer
    # fits VMEM, add an L grid axis ('arbitrary') with an online-softmax
    # accumulator instead of holding the full (Lp, U)/(Lp, R) tiles.

    x_mxu = x.astype(mxu_dtype)
    w1_mxu = w1.astype(mxu_dtype)
    w2_mxu = w2.astype(mxu_dtype)
    b1_2d = b1.reshape(1, Up).astype(jnp.float32)
    b2_2d = b2.reshape(1, R).astype(jnp.float32)
    gamma_3d = gamma.reshape(1, 1, H).astype(jnp.float32)
    beta_3d = beta.reshape(1, 1, H).astype(jnp.float32)

    # VMEM budget from the tile footprint, capped at ~78% of physical per-core
    # VMEM (headroom on v7x's 64 MiB; larger tiles admissible on 128-MiB parts).
    itemsize_x = jnp.dtype(mxu_dtype).itemsize
    bytes_per_step = (
        TB * Lp * H * itemsize_x                          # x block
        + TB * Lp * 4                                     # mask block
        + (H * Up + Up * R) * itemsize_x                  # weights
        + (Up + R + 2 * H) * 4                            # biases / gamma / beta
        + TB * R * Lp * jnp.dtype(alphas_dtype).itemsize  # alphas out block
        + TB * R * H * 4                                  # output block
        + TB * Lp * (Up + R) * 4                          # f32 intermediates
    )
    vmem_limit = int(min(max(2 * bytes_per_step + (8 << 20), 32 << 20),
                         int(0.78 * vmem_cap)))

    out_shape = (
        jax.ShapeDtypeStruct((B, R, Lp), alphas_dtype),   # alphas, module layout
        jax.ShapeDtypeStruct((B, R, H), jnp.float32),
    )

    def _call(single_buffer_weights):
        # Weights / biases never change across the batch grid: single-buffer
        # them (reclaims VMEM, esp. on v7x); keep double-buffering on x / mask
        # and the outputs.
        def const_spec(shape, index_map):
            if single_buffer_weights:
                return pl.BlockSpec(shape, index_map, pipeline_mode=pl.Buffered(1))
            return pl.BlockSpec(shape, index_map)

        f = pl.pallas_call(
            _lin_attention_bridge_kernel,
            out_shape=out_shape,
            grid_spec=pltpu.PrefetchScalarGridSpec(
                num_scalar_prefetch=0,
                grid=grid,
                in_specs=[
                    pl.BlockSpec((TB, Lp, H), lambda b: (b, 0, 0)),   # x (bf16)
                    pl.BlockSpec((TB, 1, Lp), lambda b: (b, 0, 0)),   # raw mask
                    const_spec((H, Up), lambda b: (0, 0)),            # W1
                    const_spec((1, Up), lambda b: (0, 0)),            # b1
                    const_spec((Up, R), lambda b: (0, 0)),            # W2
                    const_spec((1, R), lambda b: (0, 0)),             # b2
                    const_spec((1, 1, H), lambda b: (0, 0, 0)),       # gamma
                    const_spec((1, 1, H), lambda b: (0, 0, 0)),       # beta
                ],
                out_specs=[
                    pl.BlockSpec((TB, R, Lp), lambda b: (b, 0, 0)),   # alphas (B,R,L)
                    pl.BlockSpec((TB, R, H), lambda b: (b, 0, 0)),    # output
                ],
            ),
            compiler_params=pltpu.CompilerParams(
                dimension_semantics=("parallel",),
                vmem_limit_bytes=vmem_limit,
            ),
        )
        res = f(x_mxu, mask, w1_mxu, b1_2d, w2_mxu, b2_2d, gamma_3d, beta_3d)
        jax.block_until_ready(res)
        return res

    try:
        alphas_p, out = _call(True)
    except Exception:
        # pipeline_mode=pl.Buffered(1) unsupported on this jax version/backend:
        # fall back to default double-buffering (correctness unaffected).
        alphas_p, out = _call(False)

    alphas = alphas_p[:, :, :L] if Lp != L else alphas_p
    # TODO(synk): the module also caches self.M = output.transpose(0, 1); that
    # is stateful side-bookkeeping, not part of the functional forward here.
    return alphas, out


def _reference(x, mask, w1, b1, w2, b2, gamma, beta, mxu_dtype=None):
    """Pure-JAX reference mirroring the PyTorch forward. If mxu_dtype is given,
    matmul operands are rounded to it (f32 accumulation), mirroring the kernel's
    mixed-precision policy."""
    B, L, H = x.shape
    cast = (lambda a: a.astype(mxu_dtype)) if mxu_dtype is not None else (lambda a: a)
    dn2 = (((1,), (0,)), ((), ()))
    hbar = jax.lax.dot_general(cast(x.reshape(-1, H)), cast(w1), dn2,
                               preferred_element_type=jnp.float32) + b1
    hbar = jnp.maximum(hbar, 0.0)
    scores = jax.lax.dot_general(cast(hbar), cast(w2), dn2,
                                 preferred_element_type=jnp.float32) + b2
    alphas = jnp.transpose(scores.reshape(B, L, -1), (0, 2, 1))          # (B, R, L)
    alphas = alphas + (-10000.0) * (mask == 1.0).astype(jnp.float32)
    alphas = jax.nn.softmax(alphas, axis=-1)
    ctx = jax.lax.dot_general(cast(alphas), cast(x),
                              (((2,), (1,)), ((0,), (0,))),
                              preferred_element_type=jnp.float32)        # (B, R, H)
    mu = ctx.mean(-1, keepdims=True)
    var = ((ctx - mu) ** 2).mean(-1, keepdims=True)
    out = (ctx - mu) / jnp.sqrt(var + 1e-6) * gamma + beta
    return alphas, out


if __name__ == "__main__":
    # Small shapes consistent with the module's forward (model_type='text' -> d=H).
    B, L, H = 2, 8, 32          # batch, seq_len, hidden_size
    U, R = 64, 8                # hidden_ab_size, attention_heads

    key = jax.random.PRNGKey(0)
    kx, k1, kb1, k2, kb2 = jax.random.split(key, 5)

    x = jax.random.normal(kx, (B, L, H), dtype=jnp.float32)
    w1 = jax.random.normal(k1, (H, U), dtype=jnp.float32) * 0.1      # ws1.weight.T
    b1 = jax.random.normal(kb1, (U,), dtype=jnp.float32) * 0.1       # ws1.bias
    w2 = jax.random.normal(k2, (U, R), dtype=jnp.float32) * 0.1      # ws2.weight.T
    b2 = jax.random.normal(kb2, (R,), dtype=jnp.float32) * 0.1       # ws2.bias
    gamma = jnp.ones((H,), dtype=jnp.float32)                        # LayerNorm weight
    beta = jnp.zeros((H,), dtype=jnp.float32)                        # LayerNorm bias

    # Binary mask (B, 1, L): mask==1 means the key gets ~zero attention.
    mask = jnp.zeros((B, 1, L), dtype=jnp.float32)
    mask = mask.at[0, 0, L - 2:].set(1.0)

    alphas, out = lin_attention_bridge(x, mask, w1, b1, w2, b2, gamma, beta)
    jax.block_until_ready((alphas, out))

    assert alphas.shape == (B, R, L) and out.shape == (B, R, H)
    a_k = alphas.astype(jnp.float32)

    # Check against a reference using the same bf16-operand / f32-accumulate policy
    # (tolerances account for the bf16 alphas writeback).
    a_mp, o_mp = _reference(x, mask, w1, b1, w2, b2, gamma, beta, mxu_dtype=jnp.bfloat16)
    assert jnp.allclose(a_k, a_mp, atol=1e-2, rtol=1e-2)
    assert jnp.allclose(out, o_mp, atol=3e-2, rtol=3e-2)

    # Loose check against the pure-f32 PyTorch semantics (bounded by bf16 rounding).
    a_f32, o_f32 = _reference(x, mask, w1, b1, w2, b2, gamma, beta)
    assert jnp.allclose(a_k, a_f32, atol=3e-2, rtol=3e-2)
    assert jnp.allclose(out, o_f32, atol=1e-1, rtol=1e-1)

    # Attention rows sum to 1 (exact softmax divide; only bf16 storage rounding left).
    assert jnp.allclose(a_k.sum(-1), 1.0, atol=5e-3)
    # Masked keys receive ~zero attention.
    assert float(a_k[0, :, L - 2:].max()) < 1e-6

    print("KERNEL_OK")
</pallas_src>

<mosaic_0001>
module attributes {stable_mosaic.version = 11 : i64} {
  func.func @_lin_attention_bridge_kernel(%arg0: i32, %arg1: memref<1x16x32xbf16, #tpu.memory_space<vmem>>, %arg2: memref<1x1x16xf32, #tpu.memory_space<vmem>>, %arg3: memref<32x128xbf16, #tpu.memory_space<vmem>>, %arg4: memref<1x128xf32, #tpu.memory_space<vmem>>, %arg5: memref<128x8xbf16, #tpu.memory_space<vmem>>, %arg6: memref<1x8xf32, #tpu.memory_space<vmem>>, %arg7: memref<1x1x32xf32, #tpu.memory_space<vmem>>, %arg8: memref<1x1x32xf32, #tpu.memory_space<vmem>>, %arg9: memref<1x8x16xbf16, #tpu.memory_space<vmem>>, %arg10: memref<1x8x32xf32, #tpu.memory_space<vmem>>) attributes {dimension_semantics = [#tpu.dimension_semantics<parallel>], iteration_bounds = array<i64: 2>, scalar_prefetch = 0 : i64, scratch_operands = 0 : i64, tpu.core_type = #tpu.core_type<tc>, window_params = [{transform_indices = @transform_0, window_bounds = array<i64: 1, 16, 32>}, {transform_indices = @transform_1, window_bounds = array<i64: 1, 1, 16>}, {pipeline_mode = #tpu.pipeline_mode<synchronous>, transform_indices = @transform_2, window_bounds = array<i64: 32, 128>}, {pipeline_mode = #tpu.pipeline_mode<synchronous>, transform_indices = @transform_3, window_bounds = array<i64: 1, 128>}, {pipeline_mode = #tpu.pipeline_mode<synchronous>, transform_indices = @transform_4, window_bounds = array<i64: 128, 8>}, {pipeline_mode = #tpu.pipeline_mode<synchronous>, transform_indices = @transform_5, window_bounds = array<i64: 1, 8>}, {pipeline_mode = #tpu.pipeline_mode<synchronous>, transform_indices = @transform_6, window_bounds = array<i64: 1, 1, 32>}, {pipeline_mode = #tpu.pipeline_mode<synchronous>, transform_indices = @transform_7, window_bounds = array<i64: 1, 1, 32>}, {transform_indices = @transform_8, window_bounds = array<i64: 1, 8, 16>}, {transform_indices = @transform_9, window_bounds = array<i64: 1, 8, 32>}]} {
    %c0 = arith.constant 0 : index
    %c0_0 = arith.constant 0 : index
    %c0_1 = arith.constant 0 : index
    %0 = vector.load %arg1[%c0, %c0_0, %c0_1] : memref<1x16x32xbf16, #tpu.memory_space<vmem>>, vector<1x16x32xbf16>
    %1 = vector.shape_cast %0 : vector<1x16x32xbf16> to vector<16x32xbf16>
    %c0_2 = arith.constant 0 : index
    %c0_3 = arith.constant 0 : index
    %2 = vector.load %arg3[%c0_2, %c0_3] : memref<32x128xbf16, #tpu.memory_space<vmem>>, vector<32x128xbf16>
    %cst = arith.constant dense<0.000000e+00> : vector<16x128xf32>
    %3 = tpu.matmul %1, %2, %cst {dimension_numbers = #tpu.dot_dimension_numbers<[1], [0], [0], [1], [0, 0, 1, 1], [], []>} : vector<16x32xbf16>, vector<32x128xbf16>, vector<16x128xf32> -> vector<16x128xf32>
    %c0_4 = arith.constant 0 : index
    %c0_5 = arith.constant 0 : index
    %4 = vector.load %arg4[%c0_4, %c0_5] : memref<1x128xf32, #tpu.memory_space<vmem>>, vector<1x128xf32>
    %5 = vector.broadcast %4 : vector<1x128xf32> to vector<16x128xf32>
    %6 = arith.addf %3, %5 : vector<16x128xf32>
    %cst_6 = arith.constant 0.000000e+00 : f32
    %7 = vector.broadcast %cst_6 : f32 to vector<16x128xf32>
    %8 = arith.maximumf %6, %7 : vector<16x128xf32>
    %9 = arith.truncf %8 : vector<16x128xf32> to vector<16x128xbf16>
    %c0_7 = arith.constant 0 : index
    %c0_8 = arith.constant 0 : index
    %10 = vector.load %arg5[%c0_7, %c0_8] : memref<128x8xbf16, #tpu.memory_space<vmem>>, vector<128x8xbf16>
    %cst_9 = arith.constant dense<0.000000e+00> : vector<16x8xf32>
    %11 = tpu.matmul %9, %10, %cst_9 {dimension_numbers = #tpu.dot_dimension_numbers<[1], [0], [0], [1], [0, 0, 1, 1], [], []>} : vector<16x128xbf16>, vector<128x8xbf16>, vector<16x8xf32> -> vector<16x8xf32>
    %c0_10 = arith.constant 0 : index
    %c0_11 = arith.constant 0 : index
    %12 = vector.load %arg6[%c0_10, %c0_11] : memref<1x8xf32, #tpu.memory_space<vmem>>, vector<1x8xf32>
    %13 = vector.broadcast %12 : vector<1x8xf32> to vector<16x8xf32>
    %14 = arith.addf %11, %13 : vector<16x8xf32>
    %15 = vector.shape_cast %14 : vector<16x8xf32> to vector<1x16x8xf32>
    %16 = tpu.transpose %15, [0, 2, 1] : vector<1x16x8xf32> -> vector<1x8x16xf32>
    %c0_12 = arith.constant 0 : index
    %c0_13 = arith.constant 0 : index
    %c0_14 = arith.constant 0 : index
    %17 = vector.load %arg2[%c0_12, %c0_13, %c0_14] : memref<1x1x16xf32, #tpu.memory_space<vmem>>, vector<1x1x16xf32>
    %cst_15 = arith.constant 5.000000e-01 : f32
    %18 = vector.broadcast %cst_15 : f32 to vector<1x1x16xf32>
    %19 = arith.cmpf oge, %17, %18 : vector<1x1x16xf32>
    %cst_16 = arith.constant -1.000000e+04 : f32
    %cst_17 = arith.constant 0.000000e+00 : f32
    %20 = vector.broadcast %cst_16 : f32 to vector<1x1x16xf32>
    %21 = vector.broadcast %cst_17 : f32 to vector<1x1x16xf32>
    %22 = arith.select %19, %20, %21 : vector<1x1x16xi1>, vector<1x1x16xf32>
    %23 = vector.broadcast %22 : vector<1x1x16xf32> to vector<1x8x16xf32>
    %24 = arith.addf %16, %23 : vector<1x8x16xf32>
    %cst_18 = arith.constant dense<0xFF800000> : vector<1x8xf32>
    %25 = vector.multi_reduction <maximumf>, %24, %cst_18 [2] : vector<1x8x16xf32> to vector<1x8xf32>
    %26 = vector.shape_cast %25 : vector<1x8xf32> to vector<1x8x1xf32>
    %27 = vector.broadcast %26 : vector<1x8x1xf32> to vector<1x8x16xf32>
    %28 = arith.subf %24, %27 : vector<1x8x16xf32>
    %29 = math.exp %28 : vector<1x8x16xf32>
    %cst_19 = arith.constant dense<0.000000e+00> : vector<1x8xf32>
    %30 = vector.multi_reduction <add>, %29, %cst_19 [2] : vector<1x8x16xf32> to vector<1x8xf32>
    %31 = vector.shape_cast %30 : vector<1x8xf32> to vector<1x8x1xf32>
    %32 = vector.broadcast %31 : vector<1x8x1xf32> to vector<1x8x16xf32>
    %33 = arith.divf %29, %32 : vector<1x8x16xf32>
    %34 = arith.truncf %33 : vector<1x8x16xf32> to vector<1x8x16xbf16>
    %c0_20 = arith.constant 0 : index
    %c0_21 = arith.constant 0 : index
    %c0_22 = arith.constant 0 : index
    %35 = vector.load %arg9[%c0_20, %c0_21, %c0_22] : memref<1x8x16xbf16, #tpu.memory_space<vmem>>, vector<1x8x16xbf16>
    tpu.vector_store %arg9[%c0_20, %c0_21, %c0_22], %34 {strides = array<i32>} : memref<1x8x16xbf16, #tpu.memory_space<vmem>>, vector<1x8x16xbf16>,
    %36 = arith.truncf %33 : vector<1x8x16xf32> to vector<1x8x16xbf16>
    %cst_23 = arith.constant dense<0.000000e+00> : vector<1x8x32xf32>
    %37 = tpu.matmul %36, %0, %cst_23 {dimension_numbers = #tpu.dot_dimension_numbers<[2], [1], [1], [2], [0, 0, 0, 1, 1, 2], [0], [0]>} : vector<1x8x16xbf16>, vector<1x16x32xbf16>, vector<1x8x32xf32> -> vector<1x8x32xf32>
    %cst_24 = arith.constant dense<0.000000e+00> : vector<1x8xf32>
    %38 = vector.multi_reduction <add>, %37, %cst_24 [2] : vector<1x8x32xf32> to vector<1x8xf32>
    %39 = vector.shape_cast %38 : vector<1x8xf32> to vector<1x8x1xf32>
    %cst_25 = arith.constant 3.200000e+01 : f32
    %40 = vector.broadcast %cst_25 : f32 to vector<1x8x1xf32>
    %41 = arith.divf %39, %40 : vector<1x8x1xf32>
    %42 = vector.broadcast %41 : vector<1x8x1xf32> to vector<1x8x32xf32>
    %43 = arith.subf %37, %42 : vector<1x8x32xf32>
    %44 = arith.mulf %43, %43 : vector<1x8x32xf32>
    %cst_26 = arith.constant dense<0.000000e+00> : vector<1x8xf32>
    %45 = vector.multi_reduction <add>, %44, %cst_26 [2] : vector<1x8x32xf32> to vector<1x8xf32>
    %46 = vector.shape_cast %45 : vector<1x8xf32> to vector<1x8x1xf32>
    %cst_27 = arith.constant 3.200000e+01 : f32
    %47 = vector.broadcast %cst_27 : f32 to vector<1x8x1xf32>
    %48 = arith.divf %46, %47 : vector<1x8x1xf32>
    %49 = vector.broadcast %41 : vector<1x8x1xf32> to vector<1x8x32xf32>
    %50 = arith.subf %37, %49 : vector<1x8x32xf32>
    %cst_28 = arith.constant 9.99999997E-7 : f32
    %51 = vector.broadcast %cst_28 : f32 to vector<1x8x1xf32>
    %52 = arith.addf %48, %51 : vector<1x8x1xf32>
    %53 = math.rsqrt %52 : vector<1x8x1xf32>
    %54 = vector.broadcast %53 : vector<1x8x1xf32> to vector<1x8x32xf32>
    %55 = arith.mulf %50, %54 : vector<1x8x32xf32>
    %c0_29 = arith.constant 0 : index
    %c0_30 = arith.constant 0 : index
    %c0_31 = arith.constant 0 : index
    %56 = vector.load %arg7[%c0_29, %c0_30, %c0_31] : memref<1x1x32xf32, #tpu.memory_space<vmem>>, vector<1x1x32xf32>
    %57 = vector.broadcast %56 : vector<1x1x32xf32> to vector<1x8x32xf32>
    %58 = arith.mulf %55, %57 : vector<1x8x32xf32>
    %c0_32 = arith.constant 0 : index
    %c0_33 = arith.constant 0 : index
    %c0_34 = arith.constant 0 : index
    %59 = vector.load %arg8[%c0_32, %c0_33, %c0_34] : memref<1x1x32xf32, #tpu.memory_space<vmem>>, vector<1x1x32xf32>
    %60 = vector.broadcast %59 : vector<1x1x32xf32> to vector<1x8x32xf32>
    %61 = arith.addf %58, %60 : vector<1x8x32xf32>
    %c0_35 = arith.constant 0 : index
    %c0_36 = arith.constant 0 : index
    %c0_37 = arith.constant 0 : index
    %62 = vector.load %arg10[%c0_35, %c0_36, %c0_37] : memref<1x8x32xf32, #tpu.memory_space<vmem>>, vector<1x8x32xf32>
    tpu.vector_store %arg10[%c0_35, %c0_36, %c0_37], %61 {strides = array<i32>} : memref<1x8x32xf32, #tpu.memory_space<vmem>>, vector<1x8x32xf32>,
    return
  }
  func.func @transform_0(%arg0: i32) -> (i32, i32, i32) {
    %c0_i32 = arith.constant 0 : i32
    %c0_i32_0 = arith.constant 0 : i32
    %c0_i32_1 = arith.constant 0 : i32
    return %arg0, %c0_i32, %c0_i32_0 : i32, i32, i32
  }
  func.func @transform_1(%arg0: i32) -> (i32, i32, i32) {
    %c0_i32 = arith.constant 0 : i32
    %c0_i32_0 = arith.constant 0 : i32
    %c0_i32_1 = arith.constant 0 : i32
    return %arg0, %c0_i32, %c0_i32_0 : i32, i32, i32
  }
  func.func @transform_2(%arg0: i32) -> (i32, i32) {
    %c0_i32 = arith.constant 0 : i32
    %c0_i32_0 = arith.constant 0 : i32
    %c0_i32_1 = arith.constant 0 : i32
    return %c0_i32, %c0_i32_0 : i32, i32
  }
  func.func @transform_3(%arg0: i32) -> (i32, i32) {
    %c0_i32 = arith.constant 0 : i32
    %c0_i32_0 = arith.constant 0 : i32
    %c0_i32_1 = arith.constant 0 : i32
    return %c0_i32, %c0_i32_0 : i32, i32
  }
  func.func @transform_4(%arg0: i32) -> (i32, i32) {
    %c0_i32 = arith.constant 0 : i32
    %c0_i32_0 = arith.constant 0 : i32
    %c0_i32_1 = arith.constant 0 : i32
    return %c0_i32, %c0_i32_0 : i32, i32
  }
  func.func @transform_5(%arg0: i32) -> (i32, i32) {
    %c0_i32 = arith.constant 0 : i32
    %c0_i32_0 = arith.constant 0 : i32
    %c0_i32_1 = arith.constant 0 : i32
    return %c0_i32, %c0_i32_0 : i32, i32
  }
  func.func @transform_6(%arg0: i32) -> (i32, i32, i32) {
    %c0_i32 = arith.constant 0 : i32
    %c0_i32_0 = arith.constant 0 : i32
    %c0_i32_1 = arith.constant 0 : i32
    %c0_i32_2 = arith.constant 0 : i32
    return %c0_i32, %c0_i32_0, %c0_i32_1 : i32, i32, i32
  }
  func.func @transform_7(%arg0: i32) -> (i32, i32, i32) {
    %c0_i32 = arith.constant 0 : i32
    %c0_i32_0 = arith.constant 0 : i32
    %c0_i32_1 = arith.constant 0 : i32
    %c0_i32_2 = arith.constant 0 : i32
    return %c0_i32, %c0_i32_0, %c0_i32_1 : i32, i32, i32
  }
  func.func @transform_8(%arg0: i32) -> (i32, i32, i32) {
    %c0_i32 = arith.constant 0 : i32
    %c0_i32_0 = arith.constant 0 : i32
    %c0_i32_1 = arith.constant 0 : i32
    return %arg0, %c0_i32, %c0_i32_0 : i32, i32, i32
  }
  func.func @transform_9(%arg0: i32) -> (i32, i32, i32) {
    %c0_i32 = arith.constant 0 : i32
    %c0_i32_0 = arith.constant 0 : i32
    %c0_i32_1 = arith.constant 0 : i32
    return %arg0, %c0_i32, %c0_i32_0 : i32, i32, i32
  }
}

module attributes {stable_mosaic.version = 11 : i64} {
  func.func @_lin_attention_bridge_kernel(%arg0: i32, %arg1: memref<1x16x32xbf16, #tpu.memory_space<vmem>>, %arg2: memref<1x1x16xf32, #tpu.memory_space<vmem>>, %arg3: memref<32x128xbf16, #tpu.memory_space<vmem>>, %arg4: memref<1x128xf32, #tpu.memory_space<vmem>>, %arg5: memref<128x8xbf16, #tpu.memory_space<vmem>>, %arg6: memref<1x8xf32, #tpu.memory_space<vmem>>, %arg7: memref<1x1x32xf32, #tpu.memory_space<vmem>>, %arg8: memref<1x1x32xf32, #tpu.memory_space<vmem>>, %arg9: memref<1x8x16xbf16, #tpu.memory_space<vmem>>, %arg10: memref<1x8x32xf32, #tpu.memory_space<vmem>>) attributes {dimension_semantics = [#tpu.dimension_semantics<parallel>], iteration_bounds = array<i64: 2>, scalar_prefetch = 0 : i64, scratch_operands = 0 : i64, tpu.core_type = #tpu.core_type<tc>, window_params = [{transform_indices = @transform_0, window_bounds = array<i64: 1, 16, 32>}, {transform_indices = @transform_1, window_bounds = array<i64: 1, 1, 16>}, {pipeline_mode = #tpu.pipeline_mode<synchronous>, transform_indices = @transform_2, window_bounds = array<i64: 32, 128>}, {pipeline_mode = #tpu.pipeline_mode<synchronous>, transform_indices = @transform_3, window_bounds = array<i64: 1, 128>}, {pipeline_mode = #tpu.pipeline_mode<synchronous>, transform_indices = @transform_4, window_bounds = array<i64: 128, 8>}, {pipeline_mode = #tpu.pipeline_mode<synchronous>, transform_indices = @transform_5, window_bounds = array<i64: 1, 8>}, {pipeline_mode = #tpu.pipeline_mode<synchronous>, transform_indices = @transform_6, window_bounds = array<i64: 1, 1, 32>}, {pipeline_mode = #tpu.pipeline_mode<synchronous>, transform_indices = @transform_7, window_bounds = array<i64: 1, 1, 32>}, {transform_indices = @transform_8, window_bounds = array<i64: 1, 8, 16>}, {transform_indices = @transform_9, window_bounds = array<i64: 1, 8, 32>}]} {
    %c0 = arith.constant 0 : index
    %c0_0 = arith.constant 0 : index
    %c0_1 = arith.constant 0 : index
    %0 = vector.load %arg1[%c0, %c0_0, %c0_1] : memref<1x16x32xbf16, #tpu.memory_space<vmem>>, vector<1x16x32xbf16>
    %1 = vector.shape_cast %0 : vector<1x16x32xbf16> to vector<16x32xbf16>
    %c0_2 = arith.constant 0 : index
    %c0_3 = arith.constant 0 : index
    %2 = vector.load %arg3[%c0_2, %c0_3] : memref<32x128xbf16, #tpu.memory_space<vmem>>, vector<32x128xbf16>
    %cst = arith.constant dense<0.000000e+00> : vector<16x128xf32>
    %3 = tpu.matmul %1, %2, %cst {dimension_numbers = #tpu.dot_dimension_numbers<[1], [0], [0], [1], [0, 0, 1, 1], [], []>} : vector<16x32xbf16>, vector<32x128xbf16>, vector<16x128xf32> -> vector<16x128xf32>
    %c0_4 = arith.constant 0 : index
    %c0_5 = arith.constant 0 : index
    %4 = vector.load %arg4[%c0_4, %c0_5] : memref<1x128xf32, #tpu.memory_space<vmem>>, vector<1x128xf32>
    %5 = vector.broadcast %4 : vector<1x128xf32> to vector<16x128xf32>
    %6 = arith.addf %3, %5 : vector<16x128xf32>
    %cst_6 = arith.constant 0.000000e+00 : f32
    %7 = vector.broadcast %cst_6 : f32 to vector<16x128xf32>
    %8 = arith.maximumf %6, %7 : vector<16x128xf32>
    %9 = arith.truncf %8 : vector<16x128xf32> to vector<16x128xbf16>
    %c0_7 = arith.constant 0 : index
    %c0_8 = arith.constant 0 : index
    %10 = vector.load %arg5[%c0_7, %c0_8] : memref<128x8xbf16, #tpu.memory_space<vmem>>, vector<128x8xbf16>
    %cst_9 = arith.constant dense<0.000000e+00> : vector<16x8xf32>
    %11 = tpu.matmul %9, %10, %cst_9 {dimension_numbers = #tpu.dot_dimension_numbers<[1], [0], [0], [1], [0, 0, 1, 1], [], []>} : vector<16x128xbf16>, vector<128x8xbf16>, vector<16x8xf32> -> vector<16x8xf32>
    %c0_10 = arith.constant 0 : index
    %c0_11 = arith.constant 0 : index
    %12 = vector.load %arg6[%c0_10, %c0_11] : memref<1x8xf32, #tpu.memory_space<vmem>>, vector<1x8xf32>
    %13 = vector.broadcast %12 : vector<1x8xf32> to vector<16x8xf32>
    %14 = arith.addf %11, %13 : vector<16x8xf32>
    %15 = vector.shape_cast %14 : vector<16x8xf32> to vector<1x16x8xf32>
    %16 = tpu.transpose %15, [0, 2, 1] : vector<1x16x8xf32> -> vector<1x8x16xf32>
    %c0_12 = arith.constant 0 : index
    %c0_13 = arith.constant 0 : index
    %c0_14 = arith.constant 0 : index
    %17 = vector.load %arg2[%c0_12, %c0_13, %c0_14] : memref<1x1x16xf32, #tpu.memory_space<vmem>>, vector<1x1x16xf32>
    %cst_15 = arith.constant 5.000000e-01 : f32
    %18 = vector.broadcast %cst_15 : f32 to vector<1x1x16xf32>
    %19 = arith.cmpf oge, %17, %18 : vector<1x1x16xf32>
    %cst_16 = arith.constant -1.000000e+04 : f32
    %cst_17 = arith.constant 0.000000e+00 : f32
    %20 = vector.broadcast %cst_16 : f32 to vector<1x1x16xf32>
    %21 = vector.broadcast %cst_17 : f32 to vector<1x1x16xf32>
    %22 = arith.select %19, %20, %21 : vector<1x1x16xi1>, vector<1x1x16xf32>
    %23 = vector.broadcast %22 : vector<1x1x16xf32> to vector<1x8x16xf32>
    %24 = arith.addf %16, %23 : vector<1x8x16xf32>
    %cst_18 = arith.constant dense<0xFF800000> : vector<1x8xf32>
    %25 = vector.multi_reduction <maximumf>, %24, %cst_18 [2] : vector<1x8x16xf32> to vector<1x8xf32>
    %26 = vector.shape_cast %25 : vector<1x8xf32> to vector<1x8x1xf32>
    %27 = vector.broadcast %26 : vector<1x8x1xf32> to vector<1x8x16xf32>
    %28 = arith.subf %24, %27 : vector<1x8x16xf32>
    %29 = math.exp %28 : vector<1x8x16xf32>
    %cst_19 = arith.constant dense<0.000000e+00> : vector<1x8xf32>
    %30 = vector.multi_reduction <add>, %29, %cst_19 [2] : vector<1x8x16xf32> to vector<1x8xf32>
    %31 = vector.shape_cast %30 : vector<1x8xf32> to vector<1x8x1xf32>
    %32 = vector.broadcast %31 : vector<1x8x1xf32> to vector<1x8x16xf32>
    %33 = arith.divf %29, %32 : vector<1x8x16xf32>
    %34 = arith.truncf %33 : vector<1x8x16xf32> to vector<1x8x16xbf16>
    %c0_20 = arith.constant 0 : index
    %c0_21 = arith.constant 0 : index
    %c0_22 = arith.constant 0 : index
    %35 = vector.load %arg9[%c0_20, %c0_21, %c0_22] : memref<1x8x16xbf16, #tpu.memory_space<vmem>>, vector<1x8x16xbf16>
    tpu.vector_store %arg9[%c0_20, %c0_21, %c0_22], %34 {strides = array<i32>} : memref<1x8x16xbf16, #tpu.memory_space<vmem>>, vector<1x8x16xbf16>,
    %36 = arith.truncf %33 : vector<1x8x16xf32> to vector<1x8x16xbf16>
    %cst_23 = arith.constant dense<0.000000e+00> : vector<1x8x32xf32>
    %37 = tpu.matmul %36, %0, %cst_23 {dimension_numbers = #tpu.dot_dimension_numbers<[2], [1], [1], [2], [0, 0, 0, 1, 1, 2], [0], [0]>} : vector<1x8x16xbf16>, vector<1x16x32xbf16>, vector<1x8x32xf32> -> vector<1x8x32xf32>
    %cst_24 = arith.constant dense<0.000000e+00> : vector<1x8xf32>
    %38 = vector.multi_reduction <add>, %37, %cst_24 [2] : vector<1x8x32xf32> to vector<1x8xf32>
    %39 = vector.shape_cast %38 : vector<1x8xf32> to vector<1x8x1xf32>
    %cst_25 = arith.constant 3.200000e+01 : f32
    %40 = vector.broadcast %cst_25 : f32 to vector<1x8x1xf32>
    %41 = arith.divf %39, %40 : vector<1x8x1xf32>
    %42 = vector.broadcast %41 : vector<1x8x1xf32> to vector<1x8x32xf32>
    %43 = arith.subf %37, %42 : vector<1x8x32xf32>
    %44 = arith.mulf %43, %43 : vector<1x8x32xf32>
    %cst_26 = arith.constant dense<0.000000e+00> : vector<1x8xf32>
    %45 = vector.multi_reduction <add>, %44, %cst_26 [2] : vector<1x8x32xf32> to vector<1x8xf32>
    %46 = vector.shape_cast %45 : vector<1x8xf32> to vector<1x8x1xf32>
    %cst_27 = arith.constant 3.200000e+01 : f32
    %47 = vector.broadcast %cst_27 : f32 to vector<1x8x1xf32>
    %48 = arith.divf %46, %47 : vector<1x8x1xf32>
    %49 = vector.broadcast %41 : vector<1x8x1xf32> to vector<1x8x32xf32>
    %50 = arith.subf %37, %49 : vector<1x8x32xf32>
    %cst_28 = arith.constant 9.99999997E-7 : f32
    %51 = vector.broadcast %cst_28 : f32 to vector<1x8x1xf32>
    %52 = arith.addf %48, %51 : vector<1x8x1xf32>
    %53 = math.rsqrt %52 : vector<1x8x1xf32>
    %54 = vector.broadcast %53 : vector<1x8x1xf32> to vector<1x8x32xf32>
    %55 = arith.mulf %50, %54 : vector<1x8x32xf32>
    %c0_29 = arith.constant 0 : index
    %c0_30 = arith.constant 0 : index
    %c0_31 = arith.constant 0 : index
    %56 = vector.load %arg7[%c0_29, %c0_30, %c0_31] : memref<1x1x32xf32, #tpu.memory_space<vmem>>, vector<1x1x32xf32>
    %57 = vector.broadcast %56 : vector<1x1x32xf32> to vector<1x8x32xf32>
    %58 = arith.mulf %55, %57 : vector<1x8x32xf32>
    %c0_32 = arith.constant 0 : index
    %c0_33 = arith.constant 0 : index
    %c0_34 = arith.constant 0 : index
    %59 = vector.load %arg8[%c0_32, %c0_33, %c0_34] : memref<1x1x32xf32, #tpu.memory_space<vmem>>, vector<1x1x32xf32>
    %60 = vector.broadcast %59 : vector<1x1x32xf32> to vector<1x8x32xf32>
    %61 = arith.addf %58, %60 : vector<1x8x32xf32>
    %c0_35 = arith.constant 0 : index
    %c0_36 = arith.constant 0 : index
    %c0_37 = arith.constant 0 : index
    %62 = vector.load %arg10[%c0_35, %c0_36, %c0_37] : memref<1x8x32xf32, #tpu.memory_space<vmem>>, vector<1x8x32xf32>
    tpu.vector_store %arg10[%c0_35, %c0_36, %c0_37], %61 {strides = array<i32>} : memref<1x8x32xf32, #tpu.memory_space<vmem>>, vector<1x8x32xf32>,
    return
  }
  func.func @transform_0(%arg0: i32) -> (i32, i32, i32) {
    %c0_i32 = arith.constant 0 : i32
    %c0_i32_0 = arith.constant 0 : i32
    %c0_i32_1 = arith.constant 0 : i32
    return %arg0, %c0_i32, %c0_i32_0 : i32, i32, i32
  }
  func.func @transform_1(%arg0: i32) -> (i32, i32, i32) {
    %c0_i32 = arith.constant 0 : i32
    %c0_i32_0 = arith.constant 0 : i32
    %c0_i32_1 = arith.constant 0 : i32
    return %arg0, %c0_i32, %c0_i32_0 : i32, i32, i32
  }
  func.func @transform_2(%arg0: i32) -> (i32, i32) {
    %c0_i32 = arith.constant 0 : i32
    %c0_i32_0 = arith.constant 0 : i32
    %c0_i32_1 = arith.constant 0 : i32
    return %c0_i32, %c0_i32_0 : i32, i32
  }
  func.func @transform_3(%arg0: i32) -> (i32, i32) {
    %c0_i32 = arith.constant 0 : i32
    %c0_i32_0 = arith.constant 0 : i32
    %c0_i32_1 = arith.constant 0 : i32
    return %c0_i32, %c0_i32_0 : i32, i32
  }
  func.func @transform_4(%arg0: i32) -> (i32, i32) {
    %c0_i32 = arith.constant 0 : i32
    %c0_i32_0 = arith.constant 0 : i32
    %c0_i32_1 = arith.constant 0 : i32
    return %c0_i32, %c0_i32_0 : i32, i32
  }
  func.func @transform_5(%arg0: i32) -> (i32, i32) {
    %c0_i32 = arith.constant 0 : i32
    %c0_i32_0 = arith.constant 0 : i32
    %c0_i32_1 = arith.constant 0 : i32
    return %c0_i32, %c0_i32_0 : i32, i32
  }
  func.func @transform_6(%arg0: i32) -> (i32, i32, i32) {
    %c0_i32 = arith.constant 0 : i32
    %c0_i32_0 = arith.constant 0 : i32
    %c0_i32_1 = arith.constant 0 : i32
    %c0_i32_2 = arith.constant 0 : i32
    return %c0_i32, %c0_i32_0, %c0_i32_1 : i32, i32, i32
  }
  func.func @transform_7(%arg0: i32) -> (i32, i32, i32) {
    %c0_i32 = arith.constant 0 : i32
    %c0_i32_0 = arith.constant 0 : i32
    %c0_i32_1 = arith.constant 0 : i32
    %c0_i32_2 = arith.constant 0 : i32
    return %c0_i32, %c0_i32_0, %c0_i32_1 : i32, i32, i32
  }
  func.func @transform_8(%arg0: i32) -> (i32, i32, i32) {
    %c0_i32 = arith.constant 0 : i32
    %c0_i32_0 = arith.constant 0 : i32
    %c0_i32_1 = arith.constant 0 : i32
    return %arg0, %c0_i32, %c0_i32_0 : i32, i32, i32
  }
  func.func @transform_9(%arg0: i32) -> (i32, i32, i32) {
    %c0_i32 = arith.constant 0 : i32
    %c0_i32_0 = arith.constant 0 : i32
    %c0_i32_1 = arith.constant 0 : i32
    return %arg0, %c0_i32, %c0_i32_0 : i32, i32, i32
  }
}

</mosaic_0001>

<llo_original>
// kernel: tpu_custom_call.1
$region0: #{tpu_custom_call.1}
  #allocation0 [shape = 'u32[]', space=smem, size = 0x4, offset = 0x4, fixed_abs, tag = 'smem constant byte address 0x4 - core index']
  #allocation1 [shape = 'u32[144,128]{1,0:T(1,128)}', space=vmem, size = 0x12000, scoped, tag = 'internal scratch']
  %s0 = inlined_call_operand.vmem [shape: bf16[2,16,32], index: 0, kind: input, shape index: {}]
  %s1 = inlined_call_operand.vmem [shape: f32[2,1,16], index: 1, kind: input, shape index: {}]
  %s2 = inlined_call_operand.vmem [shape: bf16[32,128], index: 2, kind: input, shape index: {}]
  %s3 = inlined_call_operand.vmem [shape: f32[1,128], index: 3, kind: input, shape index: {}]
  %s4 = inlined_call_operand.vmem [shape: bf16[128,8], index: 4, kind: input, shape index: {}]
  %s5 = inlined_call_operand.vmem [shape: f32[1,8], index: 5, kind: input, shape index: {}]
  %s6 = inlined_call_operand.vmem [shape: f32[1,1,32], index: 6, kind: input, shape index: {}]
  %s7 = inlined_call_operand.vmem [shape: f32[1,1,32], index: 7, kind: input, shape index: {}]
  %s8 = inlined_call_operand.hbm [shape: bf16[2,8,16], index: 8, kind: output, shape index: {0}]
  %s9 = inlined_call_operand.hbm [shape: f32[2,8,32], index: 9, kind: output, shape index: {1}]
  %10 = xla_tuple %s8, %s9
  %s11 = sld [smem:[#allocation0]]
  $region73: #{tpu_custom_call.1} parent=0
    _
  %s13 = ssub.s32 1, %s11
  %s14 = scalar_select 0, %s13, %s11
  $region1: #{tpu_custom_call.1} parent=0
    #allocation2 [shape = 'u8[4096]{0}', space=vmem, size = 0x1000, scoped, tag = 'output window, operand 0']
    #allocation3 [shape = 's32[2]{0}', space=sflag, size = 0x8, scoped, tag = 'scoped memory for tpu_custom_call.1']
    #allocation4 [shape = 'u8[8192]{0}', space=vmem, size = 0x2000, scoped, tag = 'output window, operand 1']
    #allocation5 [shape = 's32[2]{0}', space=sflag, size = 0x8, scoped, tag = 'scoped memory for tpu_custom_call.1']
    %15 = vsyncpa [#allocation3], 0
    %s16 = scalar_lea.sflag [#allocation3], 1
    %17 = vsyncpa %s16, 0
    %18 = vsyncpa [#allocation5], 0
    %s19 = scalar_lea.sflag [#allocation5], 1
    %20 = vsyncpa %s19, 0
    loop: start=0, step=1, limit=4
    $region2: #{tpu_custom_call.1} parent=1 // loop_pre_header
      _
    $region3: #{tpu_custom_call.1} parent=1 // loop_header
      %s22 = sphi 0, %s26
      %p23 = scmp.ge.s32.totalorder %s22, 4
      %s32 = sphi 0, %s34
      %s35 = sphi 0, %s32
      %s36 = sphi 0, %s35
      %s52 = sphi 0, %s36
      %s58 = sphi 0, %s60
      %s61 = sphi 0, %s58
      %s62 = sphi 0, %s61
      %s78 = sphi 0, %s62
      %s82 = sphi 0, %s82
      %s84 = sphi 0, %s82
      %s85 = sphi 0, %s84
      %s99 = sphi 0, %s85
      %s103 = sphi 0, %s103
      %s105 = sphi 0, %s103
      %s106 = sphi 0, %s105
      %s120 = sphi 0, %s106
      %s124 = sphi 0, %s124
      %s126 = sphi 0, %s124
      %s127 = sphi 0, %s126
      %s141 = sphi 0, %s127
      %s145 = sphi 0, %s145
      %s147 = sphi 0, %s145
      %s148 = sphi 0, %s147
      %s162 = sphi 0, %s148
      %s166 = sphi 0, %s166
      %s168 = sphi 0, %s166
      %s169 = sphi 0, %s168
      %s183 = sphi 0, %s169
      %s187 = sphi 0, %s187
      %s189 = sphi 0, %s187
      %s190 = sphi 0, %s189
      %s204 = sphi 0, %s190
      %s210 = sphi 0, %s212
      %s213 = sphi 0, %s210
      %s214 = sphi 0, %s213
      %s230 = sphi 0, %s214
      %s236 = sphi 0, %s238
      %s239 = sphi 0, %s236
      %s240 = sphi 0, %s239
      %s256 = sphi 0, %s240
    $region4: #{tpu_custom_call.1} parent=1 // loop_header_branch
      %25 = sbr.rel (%p23) target = $region8
    $region5: #{tpu_custom_call.1} parent=1 // loop_body
      %s27 = ssub.s32 %s22, 1
      %s28 = ssub.s32 %s22, 2
      %s29 = sadd.s32 %s22, 1
      %s30 = ssub.s32 %s22, %s29
      %p31 = scmp.eq.s32.totalorder %s30, 0
      %s33 = sadd.s32 %s32, 1
      %s34 = scalar_select %p31, %s32, %s33
      %p37 = pneg %p31
      %p38 = scmp.eq.s32.totalorder %s22, 1
      %p39 = por %p37, %p38
      %p40 = scmp.ne.s32.totalorder %s32, %s35
      %p41 = scmp.eq.s32.totalorder %s22, 0
      %p42 = por %p40, %p41
      %p43 = scmp.ne.s32.totalorder %s32, %s35
      %p44 = scmp.eq.s32.totalorder %s27, 1
      %p45 = por %p43, %p44
      %p46 = scmp.ne.s32.totalorder %s35, %s36
      %p47 = scmp.eq.s32.totalorder %s27, 0
      %p48 = por %p46, %p47
      %p49 = scmp.ne.s32.totalorder %s35, %s36
      %p50 = scmp.eq.s32.totalorder %s28, 1
      %p51 = por %p49, %p50
      %p53 = scmp.ne.s32.totalorder %s36, %s52
      %p54 = scmp.eq.s32.totalorder %s28, 0
      %p55 = por %p53, %p54
      %s56 = ssub.s32 %s22, %s29
      %p57 = scmp.eq.s32.totalorder %s56, 0
      %s59 = sadd.s32 %s58, 1
      %s60 = scalar_select %p57, %s58, %s59
      %p63 = pneg %p57
      %p64 = scmp.eq.s32.totalorder %s22, 1
      %p65 = por %p63, %p64
      %p66 = scmp.ne.s32.totalorder %s58, %s61
      %p67 = scmp.eq.s32.totalorder %s22, 0
      %p68 = por %p66, %p67
      %p69 = scmp.ne.s32.totalorder %s58, %s61
      %p70 = scmp.eq.s32.totalorder %s27, 1
      %p71 = por %p69, %p70
      %p72 = scmp.ne.s32.totalorder %s61, %s62
      %p73 = scmp.eq.s32.totalorder %s27, 0
      %p74 = por %p72, %p73
      %p75 = scmp.ne.s32.totalorder %s61, %s62
      %p76 = scmp.eq.s32.totalorder %s28, 1
      %p77 = por %p75, %p76
      %p79 = scmp.ne.s32.totalorder %s62, %s78
      %p80 = scmp.eq.s32.totalorder %s28, 0
      %p81 = por %p79, %p80
      %s83 = sadd.s32 %s82, 1
      %p86 = scmp.eq.s32.totalorder %s22, 1
      %p87 = scmp.ne.s32.totalorder %s82, %s84
      %p88 = scmp.eq.s32.totalorder %s22, 0
      %p89 = por %p87, %p88
      %p90 = scmp.ne.s32.totalorder %s82, %s84
      %p91 = scmp.eq.s32.totalorder %s27, 1
      %p92 = por %p90, %p91
      %p93 = scmp.ne.s32.totalorder %s84, %s85
      %p94 = scmp.eq.s32.totalorder %s27, 0
      %p95 = por %p93, %p94
      %p96 = scmp.ne.s32.totalorder %s84, %s85
      %p97 = scmp.eq.s32.totalorder %s28, 1
      %p98 = por %p96, %p97
      %p100 = scmp.ne.s32.totalorder %s85, %s99
      %p101 = scmp.eq.s32.totalorder %s28, 0
      %p102 = por %p100, %p101
      %s104 = sadd.s32 %s103, 1
      %p107 = scmp.eq.s32.totalorder %s22, 1
      %p108 = scmp.ne.s32.totalorder %s103, %s105
      %p109 = scmp.eq.s32.totalorder %s22, 0
      %p110 = por %p108, %p109
      %p111 = scmp.ne.s32.totalorder %s103, %s105
      %p112 = scmp.eq.s32.totalorder %s27, 1
      %p113 = por %p111, %p112
      %p114 = scmp.ne.s32.totalorder %s105, %s106
      %p115 = scmp.eq.s32.totalorder %s27, 0
      %p116 = por %p114, %p115
      %p117 = scmp.ne.s32.totalorder %s105, %s106
      %p118 = scmp.eq.s32.totalorder %s28, 1
      %p119 = por %p117, %p118
      %p121 = scmp.ne.s32.totalorder %s106, %s120
      %p122 = scmp.eq.s32.totalorder %s28, 0
      %p123 = por %p121, %p122
      %s125 = sadd.s32 %s124, 1
      %p128 = scmp.eq.s32.totalorder %s22, 1
      %p129 = scmp.ne.s32.totalorder %s124, %s126
      %p130 = scmp.eq.s32.totalorder %s22, 0
      %p131 = por %p129, %p130
      %p132 = scmp.ne.s32.totalorder %s124, %s126
      %p133 = scmp.eq.s32.totalorder %s27, 1
      %p134 = por %p132, %p133
      %p135 = scmp.ne.s32.totalorder %s126, %s127
      %p136 = scmp.eq.s32.totalorder %s27, 0
      %p137 = por %p135, %p136
      %p138 = scmp.ne.s32.totalorder %s126, %s127
      %p139 = scmp.eq.s32.totalorder %s28, 1
      %p140 = por %p138, %p139
      %p142 = scmp.ne.s32.totalorder %s127, %s141
      %p143 = scmp.eq.s32.totalorder %s28, 0
      %p144 = por %p142, %p143
      %s146 = sadd.s32 %s145, 1
      %p149 = scmp.eq.s32.totalorder %s22, 1
      %p150 = scmp.ne.s32.totalorder %s145, %s147
      %p151 = scmp.eq.s32.totalorder %s22, 0
      %p152 = por %p150, %p151
      %p153 = scmp.ne.s32.totalorder %s145, %s147
      %p154 = scmp.eq.s32.totalorder %s27, 1
      %p155 = por %p153, %p154
      %p156 = scmp.ne.s32.totalorder %s147, %s148
      %p157 = scmp.eq.s32.totalorder %s27, 0
      %p158 = por %p156, %p157
      %p159 = scmp.ne.s32.totalorder %s147, %s148
      %p160 = scmp.eq.s32.totalorder %s28, 1
      %p161 = por %p159, %p160
      %p163 = scmp.ne.s32.totalorder %s148, %s162
      %p164 = scmp.eq.s32.totalorder %s28, 0
      %p165 = por %p163, %p164
      %s167 = sadd.s32 %s166, 1
      %p170 = scmp.eq.s32.totalorder %s22, 1
      %p171 = scmp.ne.s32.totalorder %s166, %s168
      %p172 = scmp.eq.s32.totalorder %s22, 0
      %p173 = por %p171, %p172
      %p174 = scmp.ne.s32.totalorder %s166, %s168
      %p175 = scmp.eq.s32.totalorder %s27, 1
      %p176 = por %p174, %p175
      %p177 = scmp.ne.s32.totalorder %s168, %s169
      %p178 = scmp.eq.s32.totalorder %s27, 0
      %p179 = por %p177, %p178
      %p180 = scmp.ne.s32.totalorder %s168, %s169
      %p181 = scmp.eq.s32.totalorder %s28, 1
      %p182 = por %p180, %p181
      %p184 = scmp.ne.s32.totalorder %s169, %s183
      %p185 = scmp.eq.s32.totalorder %s28, 0
      %p186 = por %p184, %p185
      %s188 = sadd.s32 %s187, 1
      %p191 = scmp.eq.s32.totalorder %s22, 1
      %p192 = scmp.ne.s32.totalorder %s187, %s189
      %p193 = scmp.eq.s32.totalorder %s22, 0
      %p194 = por %p192, %p193
      %p195 = scmp.ne.s32.totalorder %s187, %s189
      %p196 = scmp.eq.s32.totalorder %s27, 1
      %p197 = por %p195, %p196
      %p198 = scmp.ne.s32.totalorder %s189, %s190
      %p199 = scmp.eq.s32.totalorder %s27, 0
      %p200 = por %p198, %p199
      %p201 = scmp.ne.s32.totalorder %s189, %s190
      %p202 = scmp.eq.s32.totalorder %s28, 1
      %p203 = por %p201, %p202
      %p205 = scmp.ne.s32.totalorder %s190, %s204
      %p206 = scmp.eq.s32.totalorder %s28, 0
      %p207 = por %p205, %p206
      %s208 = ssub.s32 %s22, %s29
      %p209 = scmp.eq.s32.totalorder %s208, 0
      %s211 = sadd.s32 %s210, 1
      %s212 = scalar_select %p209, %s210, %s211
      %p215 = pneg %p209
      %p216 = scmp.eq.s32.totalorder %s22, 1
      %p217 = por %p215, %p216
      %p218 = scmp.ne.s32.totalorder %s210, %s213
      %p219 = scmp.eq.s32.totalorder %s22, 0
      %p220 = por %p218, %p219
      %p221 = scmp.ne.s32.totalorder %s210, %s213
      %p222 = scmp.eq.s32.totalorder %s27, 1
      %p223 = por %p221, %p222
      %p224 = scmp.ne.s32.totalorder %s213, %s214
      %p225 = scmp.eq.s32.totalorder %s27, 0
      %p226 = por %p224, %p225
      %p227 = scmp.ne.s32.totalorder %s213, %s214
      %p228 = scmp.eq.s32.totalorder %s28, 1
      %p229 = por %p227, %p228
      %p231 = scmp.ne.s32.totalorder %s214, %s230
      %p232 = scmp.eq.s32.totalorder %s28, 0
      %p233 = por %p231, %p232
      %s234 = ssub.s32 %s22, %s29
      %p235 = scmp.eq.s32.totalorder %s234, 0
      %s237 = sadd.s32 %s236, 1
      %s238 = scalar_select %p235, %s236, %s237
      %p241 = pneg %p235
      %p242 = scmp.eq.s32.totalorder %s22, 1
      %p243 = por %p241, %p242
      %p244 = scmp.ne.s32.totalorder %s236, %s239
      %p245 = scmp.eq.s32.totalorder %s22, 0
      %p246 = por %p244, %p245
      %p247 = scmp.ne.s32.totalorder %s236, %s239
      %p248 = scmp.eq.s32.totalorder %s27, 1
      %p249 = por %p247, %p248
      %p250 = scmp.ne.s32.totalorder %s239, %s240
      %p251 = scmp.eq.s32.totalorder %s27, 0
      %p252 = por %p250, %p251
      %p253 = scmp.ne.s32.totalorder %s239, %s240
      %p254 = scmp.eq.s32.totalorder %s28, 1
      %p255 = por %p253, %p254
      %p257 = scmp.ne.s32.totalorder %s240, %s256
      %p258 = scmp.eq.s32.totalorder %s28, 0
      %p259 = por %p257, %p258
      %p260 = scmp.le.s32.totalorder 1, %s22
      %p261 = scmp.lt.s32.totalorder %s22, 3
      %p262 = pnand %p260, %p261
      %p263 = pneg %p262
      // Predicated region
      $region9: #{tpu_custom_call.1} parent=5 // pred_check
        _
      $region10: #{tpu_custom_call.1} parent=5 // pred_check_branch
        %265 = sbr.rel (%p262) target = $region12
      $region11: #{tpu_custom_call.1} parent=5 // pred_region
        %s266 = ssub.s32 %s22, 1
        // Predicated region
        $region13: #{tpu_custom_call.1} parent=11 // pred_check
          %p267 = pneg %p95
        $region14: #{tpu_custom_call.1} parent=11 // pred_check_branch
          %269 = sbr.rel (%p267) target = $region16
        $region15: #{tpu_custom_call.1} parent=11 // pred_region
          _
        $region16: #{tpu_custom_call.1} parent=11 // pred_fallthru
          _
        // Predicated region
        $region17: #{tpu_custom_call.1} parent=11 // pred_check
          %p270 = pneg %p116
        $region18: #{tpu_custom_call.1} parent=11 // pred_check_branch
          %272 = sbr.rel (%p270) target = $region20
        $region19: #{tpu_custom_call.1} parent=11 // pred_region
          _
        $region20: #{tpu_custom_call.1} parent=11 // pred_fallthru
          _
        // Predicated region
        $region21: #{tpu_custom_call.1} parent=11 // pred_check
          %p273 = pneg %p137
        $region22: #{tpu_custom_call.1} parent=11 // pred_check_branch
          %275 = sbr.rel (%p273) target = $region24
        $region23: #{tpu_custom_call.1} parent=11 // pred_region
          _
        $region24: #{tpu_custom_call.1} parent=11 // pred_fallthru
          _
        // Predicated region
        $region25: #{tpu_custom_call.1} parent=11 // pred_check
          %p276 = pneg %p158
        $region26: #{tpu_custom_call.1} parent=11 // pred_check_branch
          %278 = sbr.rel (%p276) target = $region28
        $region27: #{tpu_custom_call.1} parent=11 // pred_region
          _
        $region28: #{tpu_custom_call.1} parent=11 // pred_fallthru
          _
        // Predicated region
        $region29: #{tpu_custom_call.1} parent=11 // pred_check
          %p279 = pneg %p179
        $region30: #{tpu_custom_call.1} parent=11 // pred_check_branch
          %281 = sbr.rel (%p279) target = $region32
        $region31: #{tpu_custom_call.1} parent=11 // pred_region
          _
        $region32: #{tpu_custom_call.1} parent=11 // pred_fallthru
          _
        // Predicated region
        $region33: #{tpu_custom_call.1} parent=11 // pred_check
          %p282 = pneg %p200
        $region34: #{tpu_custom_call.1} parent=11 // pred_check_branch
          %284 = sbr.rel (%p282) target = $region36
        $region35: #{tpu_custom_call.1} parent=11 // pred_region
          _
        $region36: #{tpu_custom_call.1} parent=11 // pred_fallthru
          _
      $region12: #{tpu_custom_call.1} parent=5 // pred_fallthru
        _
      %p285 = scmp.lt.s32.totalorder %s22, 2
      // Predicated region
      $region37: #{tpu_custom_call.1} parent=5 // pred_check
        %p286 = pneg %p285
      $region38: #{tpu_custom_call.1} parent=5 // pred_check_branch
        %288 = sbr.rel (%p286) target = $region40
      $region39: #{tpu_custom_call.1} parent=5 // pred_region
        // Predicated region
        $region41: #{tpu_custom_call.1} parent=39 // pred_check
          %p289 = pneg %p42
        $region42: #{tpu_custom_call.1} parent=39 // pred_check_branch
          %291 = sbr.rel (%p289) target = $region44
        $region43: #{tpu_custom_call.1} parent=39 // pred_region
          %p292 = scmp.lt.s32.totalorder %s22, 1
          %s293 = scalar_select %p292, %s22, 1
          %s294 = smul.addr %s293, 2
          %s295 = smul.addr %s294, 4
          %s296 = scalar_lea.vmem %s0, %s295
        $region44: #{tpu_custom_call.1} parent=39 // pred_fallthru
          _
        // Predicated region
        $region45: #{tpu_custom_call.1} parent=39 // pred_check
          %p297 = pneg %p68
        $region46: #{tpu_custom_call.1} parent=39 // pred_check_branch
          %299 = sbr.rel (%p297) target = $region48
        $region47: #{tpu_custom_call.1} parent=39 // pred_region
          %p300 = scmp.lt.s32.totalorder %s22, 1
          %s301 = scalar_select %p300, %s22, 1
          %s302 = scalar_lea.vmem %s1, %s301
        $region48: #{tpu_custom_call.1} parent=39 // pred_fallthru
          _
      $region40: #{tpu_custom_call.1} parent=5 // pred_fallthru
        _
      %p303 = scmp.le.s32.totalorder 1, %s22
      %p304 = scmp.lt.s32.totalorder %s22, 3
      %p305 = pnand %p303, %p304
      %p306 = pneg %p305
      // Predicated region
      $region49: #{tpu_custom_call.1} parent=5 // pred_check
        _
      $region50: #{tpu_custom_call.1} parent=5 // pred_check_branch
        %308 = sbr.rel (%p305) target = $region52
      $region51: #{tpu_custom_call.1} parent=5 // pred_region
        %s309 = ssub.s32 %s22, 1
        %p310 = scmp.lt.s32.totalorder %s27, 1
        %s311 = scalar_select %p310, %s27, 1
        %s312 = smul.addr %s311, 2
        %s313 = smul.addr %s312, 4
        %s314 = scalar_lea.vmem %s0, %s313
        %p315 = pneg %p48
        %p316 = pneg %p45
        %p317 = scmp.lt.s32.totalorder %s27, 1
        %s318 = scalar_select %p317, %s27, 1
        %s319 = scalar_lea.vmem %s1, %s318
        %p320 = pneg %p74
        %p321 = pneg %p71
        %p322 = pneg %p95
        %p323 = pneg %p92
        %p324 = pneg %p116
        %p325 = pneg %p113
        %p326 = pneg %p137
        %p327 = pneg %p134
        %p328 = pneg %p158
        %p329 = pneg %p155
        %p330 = pneg %p179
        %p331 = pneg %p176
        %p332 = pneg %p200
        %p333 = pneg %p197
        %p334 = pneg %p226
        %p335 = pneg %p223
        %s336 = sand.u32 %s213, 1
        %s337 = scalar_lea.sflag [#allocation3], %s336
        %s338 = sand.u32 %s213, 1
        %s339 = smul.addr %s338, 4
        %s340 = scalar_lea.vmem [#allocation2], %s339
        %p341 = pneg %p252
        %p342 = pneg %p249
        %s343 = sand.u32 %s239, 1
        %s344 = scalar_lea.sflag [#allocation5], %s343
        %s345 = sand.u32 %s239, 1
        %s346 = smul.addr %s345, 8
        %s347 = scalar_lea.vmem [#allocation4], %s346
        %p348 = scmp.lt.s32.totalorder %s27, 1
        %s349 = scalar_select %p348, %s27, 1
        %s350 = smul.addr %s349, 2
        %s351 = smul.addr %s350, 4
        %s352 = scalar_lea.vmem %s0, %s351
        %p353 = scmp.lt.s32.totalorder %s27, 1
        %s354 = scalar_select %p353, %s27, 1
        %s355 = scalar_lea.vmem %s1, %s354
        %v357 = vld [vmem:[%s352] sm:$0xf]
        %v358 = vld [vmem:[%s352 + $0x4] sm:$0xf]
        %v359 = vld [vmem:[%s2] sm:$0xf]
        %v360 = vld [vmem:[%s2 + $0x4] sm:$0xf]
        %v361 = vld [vmem:[%s2 + $0x8] sm:$0xf]
        %v362 = vld [vmem:[%s2 + $0xc] sm:$0xf]
        %v363 = vld [vmem:[%s3] sm:$0x1]
        %v365 = vlaneseq
        %v366 = vshrl.u32 %v365, 7
        %v367 = vsub.s32 0, %v366
        %v368 = vrot.slane %v363, %v367
        %v372 = vunpack.c.l.b16 %v357
        %v373 = vunpack.c.l.b16 %v358
        %v374 = vpack.c.b16 %v373, %v372
        %v379 = vunpack.c.l.b16 %v359
        %v380 = vunpack.c.l.b16 %v360
        %v381 = vunpack.c.l.b16 %v361
        %v382 = vunpack.c.l.b16 %v362
        %v383 = vpack.c.b16 %v380, %v379
        %v384 = vpack.c.b16 %v382, %v381
        %vm387 = vcmask 261120
        %v389 = vsel %vm387, %v374, 0
        %391 = vmatprep.subr.bf16.mxu0 0
        %392 = vmatpush1.bf16.msra.mxu0 %v383
        %393 = vmatprep.subr.bf16.mxu0 0
        %394 = vmatpush1.bf16.msra.mxu0 %v384
        %395 = vmatprep.subr.bf16.mxu0 0
        %396 = vmatpush1.bf16.msra.mxu0 0
        %397 = vmatprep.subr.bf16.mxu0 0
        %398 = vmatpush1.bf16.msra.mxu0 0
        %399 = vmatprep.subr.bf16.mxu0 0
        %400 = vmatpush1.bf16.msra.mxu0 0
        %401 = vmatprep.subr.bf16.mxu0 0
        %402 = vmatpush1.bf16.msra.mxu0 0
        %403 = vmatprep.subr.bf16.mxu0 0
        %404 = vmatpush1.bf16.msra.mxu0 0
        %405 = vmatprep.subr.bf16.mxu0 0
        %406 = vmatpush1.bf16.msra.mxu0 0
        %407 = vmatprep.subr.bf16.mxu0 0
        %408 = vmatpush1.bf16.msra.mxu0 0
        %409 = vmatprep.subr.bf16.mxu0 0
        %410 = vmatpush1.bf16.msra.mxu0 0
        %411 = vmatprep.subr.bf16.mxu0 0
        %412 = vmatpush1.bf16.msra.mxu0 0
        %413 = vmatprep.subr.bf16.mxu0 0
        %414 = vmatpush1.bf16.msra.mxu0 0
        %415 = vmatprep.subr.bf16.mxu0 0
        %416 = vmatpush1.bf16.msra.mxu0 0
        %417 = vmatprep.subr.bf16.mxu0 0
        %418 = vmatpush1.bf16.msra.mxu0 0
        %419 = vmatprep.subr.bf16.mxu0 0
        %420 = vmatpush1.bf16.msra.mxu0 0
        %421 = vmatprep.subr.bf16.mxu0 0
        %422 = vmatpush1.bf16.msra.mxu0 0
        %423 = vmatprep.mubr.bf16.mxu0 0
        %424 = vmatmul.mubr.bf16.gmra.mrb[0].mxu0 %v389
        %v425 = vpop.f32.mrb[0].mxu0
        %v426 = vadd.f32 %v368, %v425
        %v427 = vpop.f32.mrb[0].mxu0
        %v428 = vpop.f32.mrb[0].mxu0
        %v429 = vadd.f32 %v368, %v428
        %v430 = vpop.f32.mrb[0].mxu0
        %431 = vdwg.mxu0
        %v432 = vmax.f32 %v426, 0.0
        %v433 = vmax.f32 %v429, 0.0
        %v434 = vpack.c.bf16 %v433, %v432
        %v435 = vld [vmem:[%s4] sm:$0xf]
        %v436 = vld [vmem:[%s4 + $0x4] sm:$0xf]
        %v437 = vld [vmem:[%s4 + $0x8] sm:$0xf]
        %v438 = vld [vmem:[%s4 + $0xc] sm:$0xf]
        %v439 = vld [vmem:[%s4 + $0x10] sm:$0xf]
        %v440 = vld [vmem:[%s4 + $0x14] sm:$0xf]
        %v441 = vld [vmem:[%s4 + $0x18] sm:$0xf]
        %v442 = vld [vmem:[%s4 + $0x1c] sm:$0xf]
        %v443 = vld [vmem:[%s4 + $0x20] sm:$0xf]
        %v444 = vld [vmem:[%s4 + $0x24] sm:$0xf]
        %v445 = vld [vmem:[%s4 + $0x28] sm:$0xf]
        %v446 = vld [vmem:[%s4 + $0x2c] sm:$0xf]
        %v447 = vld [vmem:[%s4 + $0x30] sm:$0xf]
        %v448 = vld [vmem:[%s4 + $0x34] sm:$0xf]
        %v449 = vld [vmem:[%s4 + $0x38] sm:$0xf]
        %v450 = vld [vmem:[%s4 + $0x3c] sm:$0xf]
        %v451 = vld [vmem:[%s5] sm:$0x1]
        %v453 = vlaneseq
        %v454 = vshrl.u32 %v453, 7
        %v455 = vsub.s32 0, %v454
        %v456 = vrot.slane %v451, %v455
        %v474 = vunpack.c.l.b16 %v435
        %v475 = vunpack.c.l.b16 %v436
        %v476 = vunpack.c.l.b16 %v437
        %v477 = vunpack.c.l.b16 %v438
        %v478 = vunpack.c.l.b16 %v439
        %v479 = vunpack.c.l.b16 %v440
        %v480 = vunpack.c.l.b16 %v441
        %v481 = vunpack.c.l.b16 %v442
        %v482 = vunpack.c.l.b16 %v443
        %v483 = vunpack.c.l.b16 %v444
        %v484 = vunpack.c.l.b16 %v445
        %v485 = vunpack.c.l.b16 %v446
        %v486 = vunpack.c.l.b16 %v447
        %v487 = vunpack.c.l.b16 %v448
        %v488 = vunpack.c.l.b16 %v449
        %v489 = vunpack.c.l.b16 %v450
        %v490 = vpack.c.b16 %v475, %v474
        %v491 = vpack.c.b16 %v477, %v476
        %v492 = vpack.c.b16 %v479, %v478
        %v493 = vpack.c.b16 %v481, %v480
        %v494 = vpack.c.b16 %v483, %v482
        %v495 = vpack.c.b16 %v485, %v484
        %v496 = vpack.c.b16 %v487, %v486
        %v497 = vpack.c.b16 %v489, %v488
        %506 = vmatprep.subr.bf16.mxu0 0
        %507 = vmatpush1.bf16.msra.mxu0 %v490
        %508 = vmatprep.subr.bf16.mxu0 0
        %509 = vmatpush1.bf16.msra.mxu0 %v491
        %510 = vmatprep.subr.bf16.mxu0 0
        %511 = vmatpush1.bf16.msra.mxu0 %v492
        %512 = vmatprep.subr.bf16.mxu0 0
        %513 = vmatpush1.bf16.msra.mxu0 %v493
        %514 = vmatprep.subr.bf16.mxu0 0
        %515 = vmatpush1.bf16.msra.mxu0 %v494
        %516 = vmatprep.subr.bf16.mxu0 0
        %517 = vmatpush1.bf16.msra.mxu0 %v495
        %518 = vmatprep.subr.bf16.mxu0 0
        %519 = vmatpush1.bf16.msra.mxu0 %v496
        %520 = vmatprep.subr.bf16.mxu0 0
        %521 = vmatpush1.bf16.msra.mxu0 %v497
        %522 = vmatprep.subr.bf16.mxu0 0
        %523 = vmatpush1.bf16.msra.mxu0 0
        %524 = vmatprep.subr.bf16.mxu0 0
        %525 = vmatpush1.bf16.msra.mxu0 0
        %526 = vmatprep.subr.bf16.mxu0 0
        %527 = vmatpush1.bf16.msra.mxu0 0
        %528 = vmatprep.subr.bf16.mxu0 0
        %529 = vmatpush1.bf16.msra.mxu0 0
        %530 = vmatprep.subr.bf16.mxu0 0
        %531 = vmatpush1.bf16.msra.mxu0 0
        %532 = vmatprep.subr.bf16.mxu0 0
        %533 = vmatpush1.bf16.msra.mxu0 0
        %534 = vmatprep.subr.bf16.mxu0 0
        %535 = vmatpush1.bf16.msra.mxu0 0
        %536 = vmatprep.subr.bf16.mxu0 0
        %537 = vmatpush1.bf16.msra.mxu0 0
        %538 = vmatprep.mubr.bf16.mxu0 0
        %539 = vmatmul.mubr.bf16.gmra.mrb[0].mxu0 %v434
        %v540 = vpop.f32.mrb[0].mxu0
        %v541 = vadd.f32 %v456, %v540
        %v542 = vpop.f32.mrb[0].mxu0
        %v543 = vpop.f32.mrb[0].mxu0
        %v544 = vadd.f32 %v456, %v543
        %v545 = vpop.f32.mrb[0].mxu0
        %546 = vdwg.mxu0
        %547 = vxpose.xlu0.b32.start [1/16] %v541, 128
        %548 = vxpose.xlu0.b32.cont [2/16] %v544, 128
        %549 = vxpose.xlu0.b32.cont [3/16] 0.0, 128
        %550 = vxpose.xlu0.b32.cont [4/16] 0.0, 128
        %551 = vxpose.xlu0.b32.cont [5/16] 0.0, 128
        %552 = vxpose.xlu0.b32.cont [6/16] 0.0, 128
        %553 = vxpose.xlu0.b32.cont [7/16] 0.0, 128
        %554 = vxpose.xlu0.b32.cont [8/16] 0.0, 128
        %555 = vxpose.xlu0.b32.cont [9/16] 0.0, 128
        %556 = vxpose.xlu0.b32.cont [10/16] 0.0, 128
        %557 = vxpose.xlu0.b32.cont [11/16] 0.0, 128
        %558 = vxpose.xlu0.b32.cont [12/16] 0.0, 128
        %559 = vxpose.xlu0.b32.cont [13/16] 0.0, 128
        %560 = vxpose.xlu0.b32.cont [14/16] 0.0, 128
        %561 = vxpose.xlu0.b32.cont [15/16] 0.0, 128
        %562 = vxpose.xlu0.b32.end [16/16] 0.0, 128
        %v563 = vpop.trf.xlu0
        %v564 = vpop.trf.xlu0
        %v565 = vpop.trf.xlu0
        %v566 = vpop.trf.xlu0
        %v567 = vpop.trf.xlu0
        %v568 = vpop.trf.xlu0
        %v569 = vpop.trf.xlu0
        %v570 = vpop.trf.xlu0
        %v571 = vpop.trf.xlu0
        %v572 = vpop.trf.xlu0
        %v573 = vpop.trf.xlu0
        %v574 = vpop.trf.xlu0
        %v575 = vpop.trf.xlu0
        %v576 = vpop.trf.xlu0
        %v577 = vpop.trf.xlu0
        %v578 = vpop.trf.xlu0
        %v579 = vld [vmem:[%s355] sm:$0x1]
        %vm580 = vcmp.ge.f32.partialorder %v579, 0.5
        %v581 = vsel %vm580, -10000.0, 0.0
        %v583 = vlaneseq
        %v584 = vshrl.u32 %v583, 7
        %v585 = vsub.s32 0, %v584
        %v586 = vrot.slane %v581, %v585
        %v588 = vadd.f32 %v563, %v586
        %vm589 = vcmask 130048
        %v590 = vsel %vm589, %v588, -inf
        %591 = vmax.xlane.f32.xlu0 %v590
        %v592 = vpop.xlane.xlu0 %591
        %v593 = vsub.f32 %v588, %v592
        %v594 = vmul.f32 %v593, 1.442695
        %v595 = vpow.pop %v594
        %v596 = vsel %vm589, %v595, 0.0
        %597 = vadd.xlane.f32.xlu0 %v596
        %v598 = vpop.xlane.xlu0 %597
        %v599 = vrcp.pop %v598
        %v600 = vmul.f32 %v595, %v599
        %v601 = vpack.c.bf16 %v600, %v600
        %vm602 = vcmask 125952
        %603 = vst.msk [vmem:[%s340] sm:$0xf] %vm602, %v601
        %v606 = vsel %vm589, %v601, 0
        %608 = vmatprep.subr.bf16.mxu0 0
        %609 = vmatpush1.bf16.msra.mxu0 %v374
        %610 = vmatprep.subr.bf16.mxu0 0
        %611 = vmatpush1.bf16.msra.mxu0 0
        %612 = vmatprep.subr.bf16.mxu0 0
        %613 = vmatpush1.bf16.msra.mxu0 0
        %614 = vmatprep.subr.bf16.mxu0 0
        %615 = vmatpush1.bf16.msra.mxu0 0
        %616 = vmatprep.subr.bf16.mxu0 0
        %617 = vmatpush1.bf16.msra.mxu0 0
        %618 = vmatprep.subr.bf16.mxu0 0
        %619 = vmatpush1.bf16.msra.mxu0 0
        %620 = vmatprep.subr.bf16.mxu0 0
        %621 = vmatpush1.bf16.msra.mxu0 0
        %622 = vmatprep.subr.bf16.mxu0 0
        %623 = vmatpush1.bf16.msra.mxu0 0
        %624 = vmatprep.subr.bf16.mxu0 0
        %625 = vmatpush1.bf16.msra.mxu0 0
        %626 = vmatprep.subr.bf16.mxu0 0
        %627 = vmatpush1.bf16.msra.mxu0 0
        %628 = vmatprep.subr.bf16.mxu0 0
        %629 = vmatpush1.bf16.msra.mxu0 0
        %630 = vmatprep.subr.bf16.mxu0 0
        %631 = vmatpush1.bf16.msra.mxu0 0
        %632 = vmatprep.subr.bf16.mxu0 0
        %633 = vmatpush1.bf16.msra.mxu0 0
        %634 = vmatprep.subr.bf16.mxu0 0
        %635 = vmatpush1.bf16.msra.mxu0 0
        %636 = vmatprep.subr.bf16.mxu0 0
        %637 = vmatpush1.bf16.msra.mxu0 0
        %638 = vmatprep.subr.bf16.mxu0 0
        %639 = vmatpush1.bf16.msra.mxu0 0
        %640 = vmatprep.mubr.bf16.mxu0 0
        %641 = vmatmul.mubr.bf16.gmra.mrb[0].mxu0 %v606
        %v642 = vpop.f32.mrb[0].mxu0
        %v643 = vadd.f32 0.0, %v642
        %v644 = vpop.f32.mrb[0].mxu0
        %v645 = vpop.f32.mrb[0].mxu0
        %v646 = vpop.f32.mrb[0].mxu0
        %647 = vdwg.mxu0
        %v648 = vsel %vm387, %v643, 0.0
        %649 = vadd.xlane.f32.xlu0 %v648
        %v650 = vpop.xlane.xlu0 %649
        %v651 = vrcp.pop 32.0
        %v652 = vmul.f32 %v650, %v651
        %v653 = vsub.f32 %v643, %v652
        %v654 = vmul.f32 %v653, %v653
        %v655 = vsel %vm387, %v654, 0.0
        %656 = vadd.xlane.f32.xlu0 %v655
        %v657 = vpop.xlane.xlu0 %656
        %v658 = vmul.f32 %v657, %v651
        %v659 = vadd.f32 %v658, 1e-06
        %v660 = vrsqrt.pop %v659
        %v661 = vmul.f32 %v653, %v660
        %v662 = vld [vmem:[%s6] sm:$0x1]
        %v664 = vlaneseq
        %v665 = vshrl.u32 %v664, 7
        %v666 = vsub.s32 0, %v665
        %v667 = vrot.slane %v662, %v666
        %v669 = vmul.f32 %v661, %v667
        %v670 = vld [vmem:[%s7] sm:$0x1]
        %v672 = vlaneseq
        %v673 = vshrl.u32 %v672, 7
        %v674 = vsub.s32 0, %v673
        %v675 = vrot.slane %v670, %v674
        %v677 = vadd.f32 %v669, %v675
        %678 = vst.msk [vmem:[%s347] sm:$0xff] %vm387, %v677
        %s679 = sand.u32 %s213, 1
        %s680 = scalar_lea.sflag [#allocation3], %s679
        %s681 = sand.u32 %s213, 1
        %s682 = smul.addr %s681, 4
        %s683 = scalar_lea.vmem [#allocation2], %s682
        %s684 = sand.u32 %s239, 1
        %s685 = scalar_lea.sflag [#allocation5], %s684
        %s686 = sand.u32 %s239, 1
        %s687 = smul.addr %s686, 8
        %s688 = scalar_lea.vmem [#allocation4], %s687
        // Predicated region
        $region53: #{tpu_custom_call.1} parent=51 // pred_check
          %p689 = pneg %p223
        $region54: #{tpu_custom_call.1} parent=51 // pred_check_branch
          %691 = sbr.rel (%p689) target = $region56
        $region55: #{tpu_custom_call.1} parent=51 // pred_region
          %s693 = ssub.s32 64, 64
          %694 = vsyncadd %s680, %s693
          %s695 = smul.addr %s27, 64
          %s696 = scalar_lea.hbm %s8, %s695
          %s698 = sshll.u32 %s683, 4
          %s699 = int_to_ptr.vmem [resolvable:$true] %s698
          %701 = dma.vmem_to_hbm [thread:$0]  %s699, 64, %s696, %s680
        $region56: #{tpu_custom_call.1} parent=51 // pred_fallthru
          _
        // Predicated region
        $region57: #{tpu_custom_call.1} parent=51 // pred_check
          %p702 = pneg %p249
        $region58: #{tpu_custom_call.1} parent=51 // pred_check_branch
          %704 = sbr.rel (%p702) target = $region60
        $region59: #{tpu_custom_call.1} parent=51 // pred_region
          %s706 = ssub.s32 128, 128
          %707 = vsyncadd %s685, %s706
          %s708 = smul.addr %s27, 128
          %s709 = scalar_lea.hbm %s9, %s708
          %s711 = sshll.u32 %s688, 4
          %s712 = int_to_ptr.vmem [resolvable:$true] %s711
          %714 = dma.vmem_to_hbm [thread:$0]  %s712, 128, %s709, %s685
        $region60: #{tpu_custom_call.1} parent=51 // pred_fallthru
          _
      $region52: #{tpu_custom_call.1} parent=5 // pred_fallthru
        _
      %p715 = scmp.le.s32.totalorder 2, %s22
      // Predicated region
      $region61: #{tpu_custom_call.1} parent=5 // pred_check
        %p716 = pneg %p715
      $region62: #{tpu_custom_call.1} parent=5 // pred_check_branch
        %718 = sbr.rel (%p716) target = $region64
      $region63: #{tpu_custom_call.1} parent=5 // pred_region
        %s719 = ssub.s32 %s22, 2
        // Predicated region
        $region65: #{tpu_custom_call.1} parent=63 // pred_check
          %p720 = pneg %p229
        $region66: #{tpu_custom_call.1} parent=63 // pred_check_branch
          %722 = sbr.rel (%p720) target = $region68
        $region67: #{tpu_custom_call.1} parent=63 // pred_region
          %s723 = sand.u32 %s214, 1
          %s724 = scalar_lea.sflag [#allocation3], %s723
          %s725 = sand.u32 %s214, 1
          %s726 = smul.addr %s725, 4
          %s727 = scalar_lea.vmem [#allocation2], %s726
          %728 = dma.done %s724, 64
        $region68: #{tpu_custom_call.1} parent=63 // pred_fallthru
          _
        // Predicated region
        $region69: #{tpu_custom_call.1} parent=63 // pred_check
          %p729 = pneg %p255
        $region70: #{tpu_custom_call.1} parent=63 // pred_check_branch
          %731 = sbr.rel (%p729) target = $region72
        $region71: #{tpu_custom_call.1} parent=63 // pred_region
          %s732 = sand.u32 %s240, 1
          %s733 = scalar_lea.sflag [#allocation5], %s732
          %s734 = sand.u32 %s240, 1
          %s735 = smul.addr %s734, 8
          %s736 = scalar_lea.vmem [#allocation4], %s735
          %737 = dma.done %s733, 128
        $region72: #{tpu_custom_call.1} parent=63 // pred_fallthru
          _
      $region64: #{tpu_custom_call.1} parent=5 // pred_fallthru
        _
    $region6: #{tpu_custom_call.1} parent=1 // loop_footer
      %s26 = sadd.s32 1, %s22
    $region7: #{tpu_custom_call.1} parent=1 // loop_footer_branch
      %21 = sbr.rel target = $region3
    $region8: #{tpu_custom_call.1} parent=1 // loop_exit
      _
    %738 = vsyncpa [#allocation3], 1
    %s739 = scalar_lea.sflag [#allocation3], 1
    %740 = vsyncpa %s739, 1
    %741 = vsyncpa [#allocation5], 1
    %s742 = scalar_lea.sflag [#allocation5], 1
    %743 = vsyncpa %s742, 1

// kernel: tpu_custom_call.1
$region0: #{tpu_custom_call.1}
  #allocation0 [shape = 'u32[]', space=smem, size = 0x4, offset = 0x4, fixed_abs, tag = 'smem constant byte address 0x4 - core index']
  #allocation1 [shape = 'u32[144,128]{1,0:T(1,128)}', space=vmem, size = 0x12000, scoped, tag = 'internal scratch']
  %s0 = inlined_call_operand.vmem [shape: bf16[2,16,32], index: 0, kind: input, shape index: {}]
  %s1 = inlined_call_operand.vmem [shape: f32[2,1,16], index: 1, kind: input, shape index: {}]
  %s2 = inlined_call_operand.vmem [shape: bf16[32,128], index: 2, kind: input, shape index: {}]
  %s3 = inlined_call_operand.vmem [shape: f32[1,128], index: 3, kind: input, shape index: {}]
  %s4 = inlined_call_operand.vmem [shape: bf16[128,8], index: 4, kind: input, shape index: {}]
  %s5 = inlined_call_operand.vmem [shape: f32[1,8], index: 5, kind: input, shape index: {}]
  %s6 = inlined_call_operand.vmem [shape: f32[1,1,32], index: 6, kind: input, shape index: {}]
  %s7 = inlined_call_operand.vmem [shape: f32[1,1,32], index: 7, kind: input, shape index: {}]
  %s8 = inlined_call_operand.hbm [shape: bf16[2,8,16], index: 8, kind: output, shape index: {0}]
  %s9 = inlined_call_operand.hbm [shape: f32[2,8,32], index: 9, kind: output, shape index: {1}]
  %10 = xla_tuple %s8, %s9
  %s11 = sld [smem:[#allocation0]]
  $region73: #{tpu_custom_call.1} parent=0
    _
  %s13 = ssub.s32 1, %s11
  %s14 = scalar_select 0, %s13, %s11
  $region1: #{tpu_custom_call.1} parent=0
    #allocation2 [shape = 'u8[4096]{0}', space=vmem, size = 0x1000, scoped, tag = 'output window, operand 0']
    #allocation3 [shape = 's32[2]{0}', space=sflag, size = 0x8, scoped, tag = 'scoped memory for tpu_custom_call.1']
    #allocation4 [shape = 'u8[8192]{0}', space=vmem, size = 0x2000, scoped, tag = 'output window, operand 1']
    #allocation5 [shape = 's32[2]{0}', space=sflag, size = 0x8, scoped, tag = 'scoped memory for tpu_custom_call.1']
    %15 = vsyncpa [#allocation3], 0
    %s16 = scalar_lea.sflag [#allocation3], 1
    %17 = vsyncpa %s16, 0
    %18 = vsyncpa [#allocation5], 0
    %s19 = scalar_lea.sflag [#allocation5], 1
    %20 = vsyncpa %s19, 0
    loop: start=0, step=1, limit=4
    $region2: #{tpu_custom_call.1} parent=1 // loop_pre_header
      _
    $region3: #{tpu_custom_call.1} parent=1 // loop_header
      %s22 = sphi 0, %s26
      %p23 = scmp.ge.s32.totalorder %s22, 4
      %s32 = sphi 0, %s34
      %s35 = sphi 0, %s32
      %s36 = sphi 0, %s35
      %s52 = sphi 0, %s36
      %s58 = sphi 0, %s60
      %s61 = sphi 0, %s58
      %s62 = sphi 0, %s61
      %s78 = sphi 0, %s62
      %s82 = sphi 0, %s82
      %s84 = sphi 0, %s82
      %s85 = sphi 0, %s84
      %s99 = sphi 0, %s85
      %s103 = sphi 0, %s103
      %s105 = sphi 0, %s103
      %s106 = sphi 0, %s105
      %s120 = sphi 0, %s106
      %s124 = sphi 0, %s124
      %s126 = sphi 0, %s124
      %s127 = sphi 0, %s126
      %s141 = sphi 0, %s127
      %s145 = sphi 0, %s145
      %s147 = sphi 0, %s145
      %s148 = sphi 0, %s147
      %s162 = sphi 0, %s148
      %s166 = sphi 0, %s166
      %s168 = sphi 0, %s166
      %s169 = sphi 0, %s168
      %s183 = sphi 0, %s169
      %s187 = sphi 0, %s187
      %s189 = sphi 0, %s187
      %s190 = sphi 0, %s189
      %s204 = sphi 0, %s190
      %s210 = sphi 0, %s212
      %s213 = sphi 0, %s210
      %s214 = sphi 0, %s213
      %s230 = sphi 0, %s214
      %s236 = sphi 0, %s238
      %s239 = sphi 0, %s236
      %s240 = sphi 0, %s239
      %s256 = sphi 0, %s240
    $region4: #{tpu_custom_call.1} parent=1 // loop_header_branch
      %25 = sbr.rel (%p23) target = $region8
    $region5: #{tpu_custom_call.1} parent=1 // loop_body
      %s27 = ssub.s32 %s22, 1
      %s28 = ssub.s32 %s22, 2
      %s29 = sadd.s32 %s22, 1
      %s30 = ssub.s32 %s22, %s29
      %p31 = scmp.eq.s32.totalorder %s30, 0
      %s33 = sadd.s32 %s32, 1
      %s34 = scalar_select %p31, %s32, %s33
      %p37 = pneg %p31
      %p38 = scmp.eq.s32.totalorder %s22, 1
      %p39 = por %p37, %p38
      %p40 = scmp.ne.s32.totalorder %s32, %s35
      %p41 = scmp.eq.s32.totalorder %s22, 0
      %p42 = por %p40, %p41
      %p43 = scmp.ne.s32.totalorder %s32, %s35
      %p44 = scmp.eq.s32.totalorder %s27, 1
      %p45 = por %p43, %p44
      %p46 = scmp.ne.s32.totalorder %s35, %s36
      %p47 = scmp.eq.s32.totalorder %s27, 0
      %p48 = por %p46, %p47
      %p49 = scmp.ne.s32.totalorder %s35, %s36
      %p50 = scmp.eq.s32.totalorder %s28, 1
      %p51 = por %p49, %p50
      %p53 = scmp.ne.s32.totalorder %s36, %s52
      %p54 = scmp.eq.s32.totalorder %s28, 0
      %p55 = por %p53, %p54
      %s56 = ssub.s32 %s22, %s29
      %p57 = scmp.eq.s32.totalorder %s56, 0
      %s59 = sadd.s32 %s58, 1
      %s60 = scalar_select %p57, %s58, %s59
      %p63 = pneg %p57
      %p64 = scmp.eq.s32.totalorder %s22, 1
      %p65 = por %p63, %p64
      %p66 = scmp.ne.s32.totalorder %s58, %s61
      %p67 = scmp.eq.s32.totalorder %s22, 0
      %p68 = por %p66, %p67
      %p69 = scmp.ne.s32.totalorder %s58, %s61
      %p70 = scmp.eq.s32.totalorder %s27, 1
      %p71 = por %p69, %p70
      %p72 = scmp.ne.s32.totalorder %s61, %s62
      %p73 = scmp.eq.s32.totalorder %s27, 0
      %p74 = por %p72, %p73
      %p75 = scmp.ne.s32.totalorder %s61, %s62
      %p76 = scmp.eq.s32.totalorder %s28, 1
      %p77 = por %p75, %p76
      %p79 = scmp.ne.s32.totalorder %s62, %s78
      %p80 = scmp.eq.s32.totalorder %s28, 0
      %p81 = por %p79, %p80
      %s83 = sadd.s32 %s82, 1
      %p86 = scmp.eq.s32.totalorder %s22, 1
      %p87 = scmp.ne.s32.totalorder %s82, %s84
      %p88 = scmp.eq.s32.totalorder %s22, 0
      %p89 = por %p87, %p88
      %p90 = scmp.ne.s32.totalorder %s82, %s84
      %p91 = scmp.eq.s32.totalorder %s27, 1
      %p92 = por %p90, %p91
      %p93 = scmp.ne.s32.totalorder %s84, %s85
      %p94 = scmp.eq.s32.totalorder %s27, 0
      %p95 = por %p93, %p94
      %p96 = scmp.ne.s32.totalorder %s84, %s85
      %p97 = scmp.eq.s32.totalorder %s28, 1
      %p98 = por %p96, %p97
      %p100 = scmp.ne.s32.totalorder %s85, %s99
      %p101 = scmp.eq.s32.totalorder %s28, 0
      %p102 = por %p100, %p101
      %s104 = sadd.s32 %s103, 1
      %p107 = scmp.eq.s32.totalorder %s22, 1
      %p108 = scmp.ne.s32.totalorder %s103, %s105
      %p109 = scmp.eq.s32.totalorder %s22, 0
      %p110 = por %p108, %p109
      %p111 = scmp.ne.s32.totalorder %s103, %s105
      %p112 = scmp.eq.s32.totalorder %s27, 1
      %p113 = por %p111, %p112
      %p114 = scmp.ne.s32.totalorder %s105, %s106
      %p115 = scmp.eq.s32.totalorder %s27, 0
      %p116 = por %p114, %p115
      %p117 = scmp.ne.s32.totalorder %s105, %s106
      %p118 = scmp.eq.s32.totalorder %s28, 1
      %p119 = por %p117, %p118
      %p121 = scmp.ne.s32.totalorder %s106, %s120
      %p122 = scmp.eq.s32.totalorder %s28, 0
      %p123 = por %p121, %p122
      %s125 = sadd.s32 %s124, 1
      %p128 = scmp.eq.s32.totalorder %s22, 1
      %p129 = scmp.ne.s32.totalorder %s124, %s126
      %p130 = scmp.eq.s32.totalorder %s22, 0
      %p131 = por %p129, %p130
      %p132 = scmp.ne.s32.totalorder %s124, %s126
      %p133 = scmp.eq.s32.totalorder %s27, 1
      %p134 = por %p132, %p133
      %p135 = scmp.ne.s32.totalorder %s126, %s127
      %p136 = scmp.eq.s32.totalorder %s27, 0
      %p137 = por %p135, %p136
      %p138 = scmp.ne.s32.totalorder %s126, %s127
      %p139 = scmp.eq.s32.totalorder %s28, 1
      %p140 = por %p138, %p139
      %p142 = scmp.ne.s32.totalorder %s127, %s141
      %p143 = scmp.eq.s32.totalorder %s28, 0
      %p144 = por %p142, %p143
      %s146 = sadd.s32 %s145, 1
      %p149 = scmp.eq.s32.totalorder %s22, 1
      %p150 = scmp.ne.s32.totalorder %s145, %s147
      %p151 = scmp.eq.s32.totalorder %s22, 0
      %p152 = por %p150, %p151
      %p153 = scmp.ne.s32.totalorder %s145, %s147
      %p154 = scmp.eq.s32.totalorder %s27, 1
      %p155 = por %p153, %p154
      %p156 = scmp.ne.s32.totalorder %s147, %s148
      %p157 = scmp.eq.s32.totalorder %s27, 0
      %p158 = por %p156, %p157
      %p159 = scmp.ne.s32.totalorder %s147, %s148
      %p160 = scmp.eq.s32.totalorder %s28, 1
      %p161 = por %p159, %p160
      %p163 = scmp.ne.s32.totalorder %s148, %s162
      %p164 = scmp.eq.s32.totalorder %s28, 0
      %p165 = por %p163, %p164
      %s167 = sadd.s32 %s166, 1
      %p170 = scmp.eq.s32.totalorder %s22, 1
      %p171 = scmp.ne.s32.totalorder %s166, %s168
      %p172 = scmp.eq.s32.totalorder %s22, 0
      %p173 = por %p171, %p172
      %p174 = scmp.ne.s32.totalorder %s166, %s168
      %p175 = scmp.eq.s32.totalorder %s27, 1
      %p176 = por %p174, %p175
      %p177 = scmp.ne.s32.totalorder %s168, %s169
      %p178 = scmp.eq.s32.totalorder %s27, 0
      %p179 = por %p177, %p178
      %p180 = scmp.ne.s32.totalorder %s168, %s169
      %p181 = scmp.eq.s32.totalorder %s28, 1
      %p182 = por %p180, %p181
      %p184 = scmp.ne.s32.totalorder %s169, %s183
      %p185 = scmp.eq.s32.totalorder %s28, 0
      %p186 = por %p184, %p185
      %s188 = sadd.s32 %s187, 1
      %p191 = scmp.eq.s32.totalorder %s22, 1
      %p192 = scmp.ne.s32.totalorder %s187, %s189
      %p193 = scmp.eq.s32.totalorder %s22, 0
      %p194 = por %p192, %p193
      %p195 = scmp.ne.s32.totalorder %s187, %s189
      %p196 = scmp.eq.s32.totalorder %s27, 1
      %p197 = por %p195, %p196
      %p198 = scmp.ne.s32.totalorder %s189, %s190
      %p199 = scmp.eq.s32.totalorder %s27, 0
      %p200 = por %p198, %p199
      %p201 = scmp.ne.s32.totalorder %s189, %s190
      %p202 = scmp.eq.s32.totalorder %s28, 1
      %p203 = por %p201, %p202
      %p205 = scmp.ne.s32.totalorder %s190, %s204
      %p206 = scmp.eq.s32.totalorder %s28, 0
      %p207 = por %p205, %p206
      %s208 = ssub.s32 %s22, %s29
      %p209 = scmp.eq.s32.totalorder %s208, 0
      %s211 = sadd.s32 %s210, 1
      %s212 = scalar_select %p209, %s210, %s211
      %p215 = pneg %p209
      %p216 = scmp.eq.s32.totalorder %s22, 1
      %p217 = por %p215, %p216
      %p218 = scmp.ne.s32.totalorder %s210, %s213
      %p219 = scmp.eq.s32.totalorder %s22, 0
      %p220 = por %p218, %p219
      %p221 = scmp.ne.s32.totalorder %s210, %s213
      %p222 = scmp.eq.s32.totalorder %s27, 1
      %p223 = por %p221, %p222
      %p224 = scmp.ne.s32.totalorder %s213, %s214
      %p225 = scmp.eq.s32.totalorder %s27, 0
      %p226 = por %p224, %p225
      %p227 = scmp.ne.s32.totalorder %s213, %s214
      %p228 = scmp.eq.s32.totalorder %s28, 1
      %p229 = por %p227, %p228
      %p231 = scmp.ne.s32.totalorder %s214, %s230
      %p232 = scmp.eq.s32.totalorder %s28, 0
      %p233 = por %p231, %p232
      %s234 = ssub.s32 %s22, %s29
      %p235 = scmp.eq.s32.totalorder %s234, 0
      %s237 = sadd.s32 %s236, 1
      %s238 = scalar_select %p235, %s236, %s237
      %p241 = pneg %p235
      %p242 = scmp.eq.s32.totalorder %s22, 1
      %p243 = por %p241, %p242
      %p244 = scmp.ne.s32.totalorder %s236, %s239
      %p245 = scmp.eq.s32.totalorder %s22, 0
      %p246 = por %p244, %p245
      %p247 = scmp.ne.s32.totalorder %s236, %s239
      %p248 = scmp.eq.s32.totalorder %s27, 1
      %p249 = por %p247, %p248
      %p250 = scmp.ne.s32.totalorder %s239, %s240
      %p251 = scmp.eq.s32.totalorder %s27, 0
      %p252 = por %p250, %p251
      %p253 = scmp.ne.s32.totalorder %s239, %s240
      %p254 = scmp.eq.s32.totalorder %s28, 1
      %p255 = por %p253, %p254
      %p257 = scmp.ne.s32.totalorder %s240, %s256
      %p258 = scmp.eq.s32.totalorder %s28, 0
      %p259 = por %p257, %p258
      %p260 = scmp.le.s32.totalorder 1, %s22
      %p261 = scmp.lt.s32.totalorder %s22, 3
      %p262 = pnand %p260, %p261
      %p263 = pneg %p262
      // Predicated region
      $region9: #{tpu_custom_call.1} parent=5 // pred_check
        _
      $region10: #{tpu_custom_call.1} parent=5 // pred_check_branch
        %265 = sbr.rel (%p262) target = $region12
      $region11: #{tpu_custom_call.1} parent=5 // pred_region
        %s266 = ssub.s32 %s22, 1
        // Predicated region
        $region13: #{tpu_custom_call.1} parent=11 // pred_check
          %p267 = pneg %p95
        $region14: #{tpu_custom_call.1} parent=11 // pred_check_branch
          %269 = sbr.rel (%p267) target = $region16
        $region15: #{tpu_custom_call.1} parent=11 // pred_region
          _
        $region16: #{tpu_custom_call.1} parent=11 // pred_fallthru
          _
        // Predicated region
        $region17: #{tpu_custom_call.1} parent=11 // pred_check
          %p270 = pneg %p116
        $region18: #{tpu_custom_call.1} parent=11 // pred_check_branch
          %272 = sbr.rel (%p270) target = $region20
        $region19: #{tpu_custom_call.1} parent=11 // pred_region
          _
        $region20: #{tpu_custom_call.1} parent=11 // pred_fallthru
          _
        // Predicated region
        $region21: #{tpu_custom_call.1} parent=11 // pred_check
          %p273 = pneg %p137
        $region22: #{tpu_custom_call.1} parent=11 // pred_check_branch
          %275 = sbr.rel (%p273) target = $region24
        $region23: #{tpu_custom_call.1} parent=11 // pred_region
          _
        $region24: #{tpu_custom_call.1} parent=11 // pred_fallthru
          _
        // Predicated region
        $region25: #{tpu_custom_call.1} parent=11 // pred_check
          %p276 = pneg %p158
        $region26: #{tpu_custom_call.1} parent=11 // pred_check_branch
          %278 = sbr.rel (%p276) target = $region28
        $region27: #{tpu_custom_call.1} parent=11 // pred_region
          _
        $region28: #{tpu_custom_call.1} parent=11 // pred_fallthru
          _
        // Predicated region
        $region29: #{tpu_custom_call.1} parent=11 // pred_check
          %p279 = pneg %p179
        $region30: #{tpu_custom_call.1} parent=11 // pred_check_branch
          %281 = sbr.rel (%p279) target = $region32
        $region31: #{tpu_custom_call.1} parent=11 // pred_region
          _
        $region32: #{tpu_custom_call.1} parent=11 // pred_fallthru
          _
        // Predicated region
        $region33: #{tpu_custom_call.1} parent=11 // pred_check
          %p282 = pneg %p200
        $region34: #{tpu_custom_call.1} parent=11 // pred_check_branch
          %284 = sbr.rel (%p282) target = $region36
        $region35: #{tpu_custom_call.1} parent=11 // pred_region
          _
        $region36: #{tpu_custom_call.1} parent=11 // pred_fallthru
          _
      $region12: #{tpu_custom_call.1} parent=5 // pred_fallthru
        _
      %p285 = scmp.lt.s32.totalorder %s22, 2
      // Predicated region
      $region37: #{tpu_custom_call.1} parent=5 // pred_check
        %p286 = pneg %p285
      $region38: #{tpu_custom_call.1} parent=5 // pred_check_branch
        %288 = sbr.rel (%p286) target = $region40
      $region39: #{tpu_custom_call.1} parent=5 // pred_region
        // Predicated region
        $region41: #{tpu_custom_call.1} parent=39 // pred_check
          %p289 = pneg %p42
        $region42: #{tpu_custom_call.1} parent=39 // pred_check_branch
          %291 = sbr.rel (%p289) target = $region44
        $region43: #{tpu_custom_call.1} parent=39 // pred_region
          %p292 = scmp.lt.s32.totalorder %s22, 1
          %s293 = scalar_select %p292, %s22, 1
          %s294 = smul.addr %s293, 2
          %s295 = smul.addr %s294, 4
          %s296 = scalar_lea.vmem %s0, %s295
        $region44: #{tpu_custom_call.1} parent=39 // pred_fallthru
          _
        // Predicated region
        $region45: #{tpu_custom_call.1} parent=39 // pred_check
          %p297 = pneg %p68
        $region46: #{tpu_custom_call.1} parent=39 // pred_check_branch
          %299 = sbr.rel (%p297) target = $region48
        $region47: #{tpu_custom_call.1} parent=39 // pred_region
          %p300 = scmp.lt.s32.totalorder %s22, 1
          %s301 = scalar_select %p300, %s22, 1
          %s302 = scalar_lea.vmem %s1, %s301
        $region48: #{tpu_custom_call.1} parent=39 // pred_fallthru
          _
      $region40: #{tpu_custom_call.1} parent=5 // pred_fallthru
        _
      %p303 = scmp.le.s32.totalorder 1, %s22
      %p304 = scmp.lt.s32.totalorder %s22, 3
      %p305 = pnand %p303, %p304
      %p306 = pneg %p305
      // Predicated region
      $region49: #{tpu_custom_call.1} parent=5 // pred_check
        _
      $region50: #{tpu_custom_call.1} parent=5 // pred_check_branch
        %308 = sbr.rel (%p305) target = $region52
      $region51: #{tpu_custom_call.1} parent=5 // pred_region
        %s309 = ssub.s32 %s22, 1
        %p310 = scmp.lt.s32.totalorder %s27, 1
        %s311 = scalar_select %p310, %s27, 1
        %s312 = smul.addr %s311, 2
        %s313 = smul.addr %s312, 4
        %s314 = scalar_lea.vmem %s0, %s313
        %p315 = pneg %p48
        %p316 = pneg %p45
        %p317 = scmp.lt.s32.totalorder %s27, 1
        %s318 = scalar_select %p317, %s27, 1
        %s319 = scalar_lea.vmem %s1, %s318
        %p320 = pneg %p74
        %p321 = pneg %p71
        %p322 = pneg %p95
        %p323 = pneg %p92
        %p324 = pneg %p116
        %p325 = pneg %p113
        %p326 = pneg %p137
        %p327 = pneg %p134
        %p328 = pneg %p158
        %p329 = pneg %p155
        %p330 = pneg %p179
        %p331 = pneg %p176
        %p332 = pneg %p200
        %p333 = pneg %p197
        %p334 = pneg %p226
        %p335 = pneg %p223
        %s336 = sand.u32 %s213, 1
        %s337 = scalar_lea.sflag [#allocation3], %s336
        %s338 = sand.u32 %s213, 1
        %s339 = smul.addr %s338, 4
        %s340 = scalar_lea.vmem [#allocation2], %s339
        %p341 = pneg %p252
        %p342 = pneg %p249
        %s343 = sand.u32 %s239, 1
        %s344 = scalar_lea.sflag [#allocation5], %s343
        %s345 = sand.u32 %s239, 1
        %s346 = smul.addr %s345, 8
        %s347 = scalar_lea.vmem [#allocation4], %s346
        %p348 = scmp.lt.s32.totalorder %s27, 1
        %s349 = scalar_select %p348, %s27, 1
        %s350 = smul.addr %s349, 2
        %s351 = smul.addr %s350, 4
        %s352 = scalar_lea.vmem %s0, %s351
        %p353 = scmp.lt.s32.totalorder %s27, 1
        %s354 = scalar_select %p353, %s27, 1
        %s355 = scalar_lea.vmem %s1, %s354
        %v357 = vld [vmem:[%s352] sm:$0xf]
        %v358 = vld [vmem:[%s352 + $0x4] sm:$0xf]
        %v359 = vld [vmem:[%s2] sm:$0xf]
        %v360 = vld [vmem:[%s2 + $0x4] sm:$0xf]
        %v361 = vld [vmem:[%s2 + $0x8] sm:$0xf]
        %v362 = vld [vmem:[%s2 + $0xc] sm:$0xf]
        %v363 = vld [vmem:[%s3] sm:$0x1]
        %v365 = vlaneseq
        %v366 = vshrl.u32 %v365, 7
        %v367 = vsub.s32 0, %v366
        %v368 = vrot.slane %v363, %v367
        %v372 = vunpack.c.l.b16 %v357
        %v373 = vunpack.c.l.b16 %v358
        %v374 = vpack.c.b16 %v373, %v372
        %v379 = vunpack.c.l.b16 %v359
        %v380 = vunpack.c.l.b16 %v360
        %v381 = vunpack.c.l.b16 %v361
        %v382 = vunpack.c.l.b16 %v362
        %v383 = vpack.c.b16 %v380, %v379
        %v384 = vpack.c.b16 %v382, %v381
        %vm387 = vcmask 261120
        %v389 = vsel %vm387, %v374, 0
        %391 = vmatprep.subr.bf16.mxu0 0
        %392 = vmatpush1.bf16.msra.mxu0 %v383
        %393 = vmatprep.subr.bf16.mxu0 0
        %394 = vmatpush1.bf16.msra.mxu0 %v384
        %395 = vmatprep.subr.bf16.mxu0 0
        %396 = vmatpush1.bf16.msra.mxu0 0
        %397 = vmatprep.subr.bf16.mxu0 0
        %398 = vmatpush1.bf16.msra.mxu0 0
        %399 = vmatprep.subr.bf16.mxu0 0
        %400 = vmatpush1.bf16.msra.mxu0 0
        %401 = vmatprep.subr.bf16.mxu0 0
        %402 = vmatpush1.bf16.msra.mxu0 0
        %403 = vmatprep.subr.bf16.mxu0 0
        %404 = vmatpush1.bf16.msra.mxu0 0
        %405 = vmatprep.subr.bf16.mxu0 0
        %406 = vmatpush1.bf16.msra.mxu0 0
        %407 = vmatprep.subr.bf16.mxu0 0
        %408 = vmatpush1.bf16.msra.mxu0 0
        %409 = vmatprep.subr.bf16.mxu0 0
        %410 = vmatpush1.bf16.msra.mxu0 0
        %411 = vmatprep.subr.bf16.mxu0 0
        %412 = vmatpush1.bf16.msra.mxu0 0
        %413 = vmatprep.subr.bf16.mxu0 0
        %414 = vmatpush1.bf16.msra.mxu0 0
        %415 = vmatprep.subr.bf16.mxu0 0
        %416 = vmatpush1.bf16.msra.mxu0 0
        %417 = vmatprep.subr.bf16.mxu0 0
        %418 = vmatpush1.bf16.msra.mxu0 0
        %419 = vmatprep.subr.bf16.mxu0 0
        %420 = vmatpush1.bf16.msra.mxu0 0
        %421 = vmatprep.subr.bf16.mxu0 0
        %422 = vmatpush1.bf16.msra.mxu0 0
        %423 = vmatprep.mubr.bf16.mxu0 0
        %424 = vmatmul.mubr.bf16.gmra.mrb[0].mxu0 %v389
        %v425 = vpop.f32.mrb[0].mxu0
        %v426 = vadd.f32 %v368, %v425
        %v427 = vpop.f32.mrb[0].mxu0
        %v428 = vpop.f32.mrb[0].mxu0
        %v429 = vadd.f32 %v368, %v428
        %v430 = vpop.f32.mrb[0].mxu0
        %431 = vdwg.mxu0
        %v432 = vmax.f32 %v426, 0.0
        %v433 = vmax.f32 %v429, 0.0
        %v434 = vpack.c.bf16 %v433, %v432
        %v435 = vld [vmem:[%s4] sm:$0xf]
        %v436 = vld [vmem:[%s4 + $0x4] sm:$0xf]
        %v437 = vld [vmem:[%s4 + $0x8] sm:$0xf]
        %v438 = vld [vmem:[%s4 + $0xc] sm:$0xf]
        %v439 = vld [vmem:[%s4 + $0x10] sm:$0xf]
        %v440 = vld [vmem:[%s4 + $0x14] sm:$0xf]
        %v441 = vld [vmem:[%s4 + $0x18] sm:$0xf]
        %v442 = vld [vmem:[%s4 + $0x1c] sm:$0xf]
        %v443 = vld [vmem:[%s4 + $0x20] sm:$0xf]
        %v444 = vld [vmem:[%s4 + $0x24] sm:$0xf]
        %v445 = vld [vmem:[%s4 + $0x28] sm:$0xf]
        %v446 = vld [vmem:[%s4 + $0x2c] sm:$0xf]
        %v447 = vld [vmem:[%s4 + $0x30] sm:$0xf]
        %v448 = vld [vmem:[%s4 + $0x34] sm:$0xf]
        %v449 = vld [vmem:[%s4 + $0x38] sm:$0xf]
        %v450 = vld [vmem:[%s4 + $0x3c] sm:$0xf]
        %v451 = vld [vmem:[%s5] sm:$0x1]
        %v453 = vlaneseq
        %v454 = vshrl.u32 %v453, 7
        %v455 = vsub.s32 0, %v454
        %v456 = vrot.slane %v451, %v455
        %v474 = vunpack.c.l.b16 %v435
        %v475 = vunpack.c.l.b16 %v436
        %v476 = vunpack.c.l.b16 %v437
        %v477 = vunpack.c.l.b16 %v438
        %v478 = vunpack.c.l.b16 %v439
        %v479 = vunpack.c.l.b16 %v440
        %v480 = vunpack.c.l.b16 %v441
        %v481 = vunpack.c.l.b16 %v442
        %v482 = vunpack.c.l.b16 %v443
        %v483 = vunpack.c.l.b16 %v444
        %v484 = vunpack.c.l.b16 %v445
        %v485 = vunpack.c.l.b16 %v446
        %v486 = vunpack.c.l.b16 %v447
        %v487 = vunpack.c.l.b16 %v448
        %v488 = vunpack.c.l.b16 %v449
        %v489 = vunpack.c.l.b16 %v450
        %v490 = vpack.c.b16 %v475, %v474
        %v491 = vpack.c.b16 %v477, %v476
        %v492 = vpack.c.b16 %v479, %v478
        %v493 = vpack.c.b16 %v481, %v480
        %v494 = vpack.c.b16 %v483, %v482
        %v495 = vpack.c.b16 %v485, %v484
        %v496 = vpack.c.b16 %v487, %v486
        %v497 = vpack.c.b16 %v489, %v488
        %506 = vmatprep.subr.bf16.mxu0 0
        %507 = vmatpush1.bf16.msra.mxu0 %v490
        %508 = vmatprep.subr.bf16.mxu0 0
        %509 = vmatpush1.bf16.msra.mxu0 %v491
        %510 = vmatprep.subr.bf16.mxu0 0
        %511 = vmatpush1.bf16.msra.mxu0 %v492
        %512 = vmatprep.subr.bf16.mxu0 0
        %513 = vmatpush1.bf16.msra.mxu0 %v493
        %514 = vmatprep.subr.bf16.mxu0 0
        %515 = vmatpush1.bf16.msra.mxu0 %v494
        %516 = vmatprep.subr.bf16.mxu0 0
        %517 = vmatpush1.bf16.msra.mxu0 %v495
        %518 = vmatprep.subr.bf16.mxu0 0
        %519 = vmatpush1.bf16.msra.mxu0 %v496
        %520 = vmatprep.subr.bf16.mxu0 0
        %521 = vmatpush1.bf16.msra.mxu0 %v497
        %522 = vmatprep.subr.bf16.mxu0 0
        %523 = vmatpush1.bf16.msra.mxu0 0
        %524 = vmatprep.subr.bf16.mxu0 0
        %525 = vmatpush1.bf16.msra.mxu0 0
        %526 = vmatprep.subr.bf16.mxu0 0
        %527 = vmatpush1.bf16.msra.mxu0 0
        %528 = vmatprep.subr.bf16.mxu0 0
        %529 = vmatpush1.bf16.msra.mxu0 0
        %530 = vmatprep.subr.bf16.mxu0 0
        %531 = vmatpush1.bf16.msra.mxu0 0
        %532 = vmatprep.subr.bf16.mxu0 0
        %533 = vmatpush1.bf16.msra.mxu0 0
        %534 = vmatprep.subr.bf16.mxu0 0
        %535 = vmatpush1.bf16.msra.mxu0 0
        %536 = vmatprep.subr.bf16.mxu0 0
        %537 = vmatpush1.bf16.msra.mxu0 0
        %538 = vmatprep.mubr.bf16.mxu0 0
        %539 = vmatmul.mubr.bf16.gmra.mrb[0].mxu0 %v434
        %v540 = vpop.f32.mrb[0].mxu0
        %v541 = vadd.f32 %v456, %v540
        %v542 = vpop.f32.mrb[0].mxu0
        %v543 = vpop.f32.mrb[0].mxu0
        %v544 = vadd.f32 %v456, %v543
        %v545 = vpop.f32.mrb[0].mxu0
        %546 = vdwg.mxu0
        %547 = vxpose.xlu0.b32.start [1/16] %v541, 128
        %548 = vxpose.xlu0.b32.cont [2/16] %v544, 128
        %549 = vxpose.xlu0.b32.cont [3/16] 0.0, 128
        %550 = vxpose.xlu0.b32.cont [4/16] 0.0, 128
        %551 = vxpose.xlu0.b32.cont [5/16] 0.0, 128
        %552 = vxpose.xlu0.b32.cont [6/16] 0.0, 128
        %553 = vxpose.xlu0.b32.cont [7/16] 0.0, 128
        %554 = vxpose.xlu0.b32.cont [8/16] 0.0, 128
        %555 = vxpose.xlu0.b32.cont [9/16] 0.0, 128
        %556 = vxpose.xlu0.b32.cont [10/16] 0.0, 128
        %557 = vxpose.xlu0.b32.cont [11/16] 0.0, 128
        %558 = vxpose.xlu0.b32.cont [12/16] 0.0, 128
        %559 = vxpose.xlu0.b32.cont [13/16] 0.0, 128
        %560 = vxpose.xlu0.b32.cont [14/16] 0.0, 128
        %561 = vxpose.xlu0.b32.cont [15/16] 0.0, 128
        %562 = vxpose.xlu0.b32.end [16/16] 0.0, 128
        %v563 = vpop.trf.xlu0
        %v564 = vpop.trf.xlu0
        %v565 = vpop.trf.xlu0
        %v566 = vpop.trf.xlu0
        %v567 = vpop.trf.xlu0
        %v568 = vpop.trf.xlu0
        %v569 = vpop.trf.xlu0
        %v570 = vpop.trf.xlu0
        %v571 = vpop.trf.xlu0
        %v572 = vpop.trf.xlu0
        %v573 = vpop.trf.xlu0
        %v574 = vpop.trf.xlu0
        %v575 = vpop.trf.xlu0
        %v576 = vpop.trf.xlu0
        %v577 = vpop.trf.xlu0
        %v578 = vpop.trf.xlu0
        %v579 = vld [vmem:[%s355] sm:$0x1]
        %vm580 = vcmp.ge.f32.partialorder %v579, 0.5
        %v581 = vsel %vm580, -10000.0, 0.0
        %v583 = vlaneseq
        %v584 = vshrl.u32 %v583, 7
        %v585 = vsub.s32 0, %v584
        %v586 = vrot.slane %v581, %v585
        %v588 = vadd.f32 %v563, %v586
        %vm589 = vcmask 130048
        %v590 = vsel %vm589, %v588, -inf
        %591 = vmax.xlane.f32.xlu0 %v590
        %v592 = vpop.xlane.xlu0 %591
        %v593 = vsub.f32 %v588, %v592
        %v594 = vmul.f32 %v593, 1.442695
        %v595 = vpow.pop %v594
        %v596 = vsel %vm589, %v595, 0.0
        %597 = vadd.xlane.f32.xlu0 %v596
        %v598 = vpop.xlane.xlu0 %597
        %v599 = vrcp.pop %v598
        %v600 = vmul.f32 %v595, %v599
        %v601 = vpack.c.bf16 %v600, %v600
        %vm602 = vcmask 125952
        %603 = vst.msk [vmem:[%s340] sm:$0xf] %vm602, %v601
        %v606 = vsel %vm589, %v601, 0
        %608 = vmatprep.subr.bf16.mxu0 0
        %609 = vmatpush1.bf16.msra.mxu0 %v374
        %610 = vmatprep.subr.bf16.mxu0 0
        %611 = vmatpush1.bf16.msra.mxu0 0
        %612 = vmatprep.subr.bf16.mxu0 0
        %613 = vmatpush1.bf16.msra.mxu0 0
        %614 = vmatprep.subr.bf16.mxu0 0
        %615 = vmatpush1.bf16.msra.mxu0 0
        %616 = vmatprep.subr.bf16.mxu0 0
        %617 = vmatpush1.bf16.msra.mxu0 0
        %618 = vmatprep.subr.bf16.mxu0 0
        %619 = vmatpush1.bf16.msra.mxu0 0
        %620 = vmatprep.subr.bf16.mxu0 0
        %621 = vmatpush1.bf16.msra.mxu0 0
        %622 = vmatprep.subr.bf16.mxu0 0
        %623 = vmatpush1.bf16.msra.mxu0 0
        %624 = vmatprep.subr.bf16.mxu0 0
        %625 = vmatpush1.bf16.msra.mxu0 0
        %626 = vmatprep.subr.bf16.mxu0 0
        %627 = vmatpush1.bf16.msra.mxu0 0
        %628 = vmatprep.subr.bf16.mxu0 0
        %629 = vmatpush1.bf16.msra.mxu0 0
        %630 = vmatprep.subr.bf16.mxu0 0
        %631 = vmatpush1.bf16.msra.mxu0 0
        %632 = vmatprep.subr.bf16.mxu0 0
        %633 = vmatpush1.bf16.msra.mxu0 0
        %634 = vmatprep.subr.bf16.mxu0 0
        %635 = vmatpush1.bf16.msra.mxu0 0
        %636 = vmatprep.subr.bf16.mxu0 0
        %637 = vmatpush1.bf16.msra.mxu0 0
        %638 = vmatprep.subr.bf16.mxu0 0
        %639 = vmatpush1.bf16.msra.mxu0 0
        %640 = vmatprep.mubr.bf16.mxu0 0
        %641 = vmatmul.mubr.bf16.gmra.mrb[0].mxu0 %v606
        %v642 = vpop.f32.mrb[0].mxu0
        %v643 = vadd.f32 0.0, %v642
        %v644 = vpop.f32.mrb[0].mxu0
        %v645 = vpop.f32.mrb[0].mxu0
        %v646 = vpop.f32.mrb[0].mxu0
        %647 = vdwg.mxu0
        %v648 = vsel %vm387, %v643, 0.0
        %649 = vadd.xlane.f32.xlu0 %v648
        %v650 = vpop.xlane.xlu0 %649
        %v651 = vrcp.pop 32.0
        %v652 = vmul.f32 %v650, %v651
        %v653 = vsub.f32 %v643, %v652
        %v654 = vmul.f32 %v653, %v653
        %v655 = vsel %vm387, %v654, 0.0
        %656 = vadd.xlane.f32.xlu0 %v655
        %v657 = vpop.xlane.xlu0 %656
        %v658 = vmul.f32 %v657, %v651
        %v659 = vadd.f32 %v658, 1e-06
        %v660 = vrsqrt.pop %v659
        %v661 = vmul.f32 %v653, %v660
        %v662 = vld [vmem:[%s6] sm:$0x1]
        %v664 = vlaneseq
        %v665 = vshrl.u32 %v664, 7
        %v666 = vsub.s32 0, %v665
        %v667 = vrot.slane %v662, %v666
        %v669 = vmul.f32 %v661, %v667
        %v670 = vld [vmem:[%s7] sm:$0x1]
        %v672 = vlaneseq
        %v673 = vshrl.u32 %v672, 7
        %v674 = vsub.s32 0, %v673
        %v675 = vrot.slane %v670, %v674
        %v677 = vadd.f32 %v669, %v675
        %678 = vst.msk [vmem:[%s347] sm:$0xff] %vm387, %v677
        %s679 = sand.u32 %s213, 1
        %s680 = scalar_lea.sflag [#allocation3], %s679
        %s681 = sand.u32 %s213, 1
        %s682 = smul.addr %s681, 4
        %s683 = scalar_lea.vmem [#allocation2], %s682
        %s684 = sand.u32 %s239, 1
        %s685 = scalar_lea.sflag [#allocation5], %s684
        %s686 = sand.u32 %s239, 1
        %s687 = smul.addr %s686, 8
        %s688 = scalar_lea.vmem [#allocation4], %s687
        // Predicated region
        $region53: #{tpu_custom_call.1} parent=51 // pred_check
          %p689 = pneg %p223
        $region54: #{tpu_custom_call.1} parent=51 // pred_check_branch
          %691 = sbr.rel (%p689) target = $region56
        $region55: #{tpu_custom_call.1} parent=51 // pred_region
          %s693 = ssub.s32 64, 64
          %694 = vsyncadd %s680, %s693
          %s695 = smul.addr %s27, 64
          %s696 = scalar_lea.hbm %s8, %s695
          %s698 = sshll.u32 %s683, 4
          %s699 = int_to_ptr.vmem [resolvable:$true] %s698
          %701 = dma.vmem_to_hbm [thread:$0]  %s699, 64, %s696, %s680
        $region56: #{tpu_custom_call.1} parent=51 // pred_fallthru
          _
        // Predicated region
        $region57: #{tpu_custom_call.1} parent=51 // pred_check
          %p702 = pneg %p249
        $region58: #{tpu_custom_call.1} parent=51 // pred_check_branch
          %704 = sbr.rel (%p702) target = $region60
        $region59: #{tpu_custom_call.1} parent=51 // pred_region
          %s706 = ssub.s32 128, 128
          %707 = vsyncadd %s685, %s706
          %s708 = smul.addr %s27, 128
          %s709 = scalar_lea.hbm %s9, %s708
          %s711 = sshll.u32 %s688, 4
          %s712 = int_to_ptr.vmem [resolvable:$true] %s711
          %714 = dma.vmem_to_hbm [thread:$0]  %s712, 128, %s709, %s685
        $region60: #{tpu_custom_call.1} parent=51 // pred_fallthru
          _
      $region52: #{tpu_custom_call.1} parent=5 // pred_fallthru
        _
      %p715 = scmp.le.s32.totalorder 2, %s22
      // Predicated region
      $region61: #{tpu_custom_call.1} parent=5 // pred_check
        %p716 = pneg %p715
      $region62: #{tpu_custom_call.1} parent=5 // pred_check_branch
        %718 = sbr.rel (%p716) target = $region64
      $region63: #{tpu_custom_call.1} parent=5 // pred_region
        %s719 = ssub.s32 %s22, 2
        // Predicated region
        $region65: #{tpu_custom_call.1} parent=63 // pred_check
          %p720 = pneg %p229
        $region66: #{tpu_custom_call.1} parent=63 // pred_check_branch
          %722 = sbr.rel (%p720) target = $region68
        $region67: #{tpu_custom_call.1} parent=63 // pred_region
          %s723 = sand.u32 %s214, 1
          %s724 = scalar_lea.sflag [#allocation3], %s723
          %s725 = sand.u32 %s214, 1
          %s726 = smul.addr %s725, 4
          %s727 = scalar_lea.vmem [#allocation2], %s726
          %728 = dma.done %s724, 64
        $region68: #{tpu_custom_call.1} parent=63 // pred_fallthru
          _
        // Predicated region
        $region69: #{tpu_custom_call.1} parent=63 // pred_check
          %p729 = pneg %p255
        $region70: #{tpu_custom_call.1} parent=63 // pred_check_branch
          %731 = sbr.rel (%p729) target = $region72
        $region71: #{tpu_custom_call.1} parent=63 // pred_region
          %s732 = sand.u32 %s240, 1
          %s733 = scalar_lea.sflag [#allocation5], %s732
          %s734 = sand.u32 %s240, 1
          %s735 = smul.addr %s734, 8
          %s736 = scalar_lea.vmem [#allocation4], %s735
          %737 = dma.done %s733, 128
        $region72: #{tpu_custom_call.1} parent=63 // pred_fallthru
          _
      $region64: #{tpu_custom_call.1} parent=5 // pred_fallthru
        _
    $region6: #{tpu_custom_call.1} parent=1 // loop_footer
      %s26 = sadd.s32 1, %s22
    $region7: #{tpu_custom_call.1} parent=1 // loop_footer_branch
      %21 = sbr.rel target = $region3
    $region8: #{tpu_custom_call.1} parent=1 // loop_exit
      _
    %738 = vsyncpa [#allocation3], 1
    %s739 = scalar_lea.sflag [#allocation3], 1
    %740 = vsyncpa %s739, 1
    %741 = vsyncpa [#allocation5], 1
    %s742 = scalar_lea.sflag [#allocation5], 1
    %743 = vsyncpa %s742, 1

</llo_original>
